<compile_context>
chip_gen: v5e
topology: v5e:2x2
jax: 0.10.0
libtpu: 0.0.40
codegen_flags: <defaults>
</compile_context>

<pallas_src>
import jax
import jax.numpy as jnp
from jax.experimental import pallas as pl
from jax.experimental.pallas import tpu as pltpu

# Model geometry fixed by the PyTorch module (fc1 expects 64 * 5 * 6 = 1920).
B = 2
C_IN, H_IN, W_IN = 7, 9, 10
C1, C2, F1, N_OUT = 32, 64, 128, 4
KH = KW = 3
OH1, OW1 = H_IN - 2, W_IN - 2            # 7, 8
OH2, OW2 = OH1 - 2, OW1 - 2              # 5, 6
OW2P = 8                                 # conv2 width padded 6 -> 8 (full sublane tile)
C_INP = 8                                # conv1 input channels padded 7 -> 8
W1P = 16                                 # conv1 output width padded 8 -> 16 for windows
K1 = KH * KW * C_INP                     # 72  : conv1 im2col K
K2 = KH * KW * C1                        # 288 : conv2 im2col K
KF1 = OH2 * OW2 * C2                     # 1920: fc1 K (valid positions only)


# ---------------------------------------------------------------------------
# Fused Pallas kernel: whole Qnet forward in VMEM / registers.
# ---------------------------------------------------------------------------
def _qnet_fused_kernel(x_ref, w1_ref, b1_ref, w2_ref, b2_ref,
                       wf1_hbm, bf1_ref, wf2_ref, bf2_ref,
                       out_ref, wf1_vmem, dma_sem):
    b = x_ref.shape[0]

    # Kick off the big fc1-weight HBM->VMEM DMA immediately; it overlaps the
    # conv1/conv2 compute below and is only waited on right before fc1.
    wf1_copy = pltpu.make_async_copy(wf1_hbm, wf1_vmem, dma_sem)
    wf1_copy.start()

    # ---- conv1 (3x3 valid) + ReLU: ONE K=72 im2col matmul ------------------
    # Build the 3 width shifts once and reuse them across the 3 height
    # offsets (height slices are leading-dim slices -> free).
    x = x_ref[...]                                               # (b, 9, 10, 8)
    xs = [x[:, :, j:j + OW1, :] for j in range(KW)]              # 3 width shifts
    cols1 = [xs[dj][:, di:di + OH1, :, :]                        # (b, 7, 8, 8)
             for di in range(KH) for dj in range(KW)]
    lhs1 = jnp.concatenate(cols1, axis=-1).reshape(b * OH1 * OW1, K1)   # (112, 72)
    h1 = jnp.maximum(
        jnp.dot(lhs1, w1_ref[...], preferred_element_type=jnp.float32)
        + b1_ref[...], 0.0)                                      # (112, 32)

    # Pad conv1 output width 8 -> 16 (tile-aligned append of zeros, kept in
    # registers) so every conv2 window is a full 8-wide sublane tile.
    h1 = h1.reshape(b, OH1, OW1, C1)
    h1 = jnp.concatenate(
        [h1, jnp.zeros((b, OH1, W1P - OW1, C1), jnp.float32)], axis=2)  # (b,7,16,32)

    # ---- conv2 (3x3 valid) + ReLU: ONE K=288 im2col matmul -----------------
    hs = [h1[:, :, j:j + OW2P, :] for j in range(KW)]            # 3 width shifts
    cols2 = [hs[dj][:, di:di + OH2, :, :]                        # (b, 5, 8, 32)
             for di in range(KH) for dj in range(KW)]
    lhs2 = jnp.concatenate(cols2, axis=-1).reshape(b * OH2 * OW2P, K2)  # (80, 288)
    h2 = jnp.maximum(
        jnp.dot(lhs2, w2_ref[...], preferred_element_type=jnp.float32)
        + b2_ref[...], 0.0)                                      # (80, 64)

    # ---- flatten the 30 VALID spatial positions (skip padded widths) so
    # fc1 collapses into a single matmul.  Ordering (hh, ww, c) matches the
    # host-side wf1 packing (torch.flatten permutation folded in).
    h2 = h2.reshape(b, OH2 * OW2P, C2)                           # (b, 40, 64)
    h2_flat = jnp.concatenate(
        [h2[:, hh * OW2P + ww, :] for hh in range(OH2) for ww in range(OW2)],
        axis=-1)                                                 # (b, 1920)

    # ---- fc1 + ReLU: single (b,1920)@(1920,128) matmul ---------------------
    wf1_copy.wait()                                              # DMA now hidden
    h3 = jnp.maximum(
        jnp.dot(h2_flat, wf1_vmem[...], preferred_element_type=jnp.float32)
        + bf1_ref[...], 0.0)                                     # (b, 128)

    # ---- fc2: single small (b, 4) store at the very end --------------------
    out = jnp.dot(h3, wf2_ref[...], preferred_element_type=jnp.float32) + bf2_ref[...]
    out_ref[...] = out.astype(out_ref.dtype)


# ---------------------------------------------------------------------------
# Parameters: PyTorch-layout init + one-time kernel-layout packing.
# ---------------------------------------------------------------------------
def init_params(key):
    ks = jax.random.split(key, 8)

    def u(k, shape, fan_in):
        bound = 1.0 / jnp.sqrt(fan_in)
        return jax.random.uniform(k, shape, jnp.float32, -bound, bound)

    return {
        "conv1_w": u(ks[0], (C1, C_IN, KH, KW), C_IN * KH * KW),
        "conv1_b": u(ks[1], (C1,), C_IN * KH * KW),
        "conv2_w": u(ks[2], (C2, C1, KH, KW), C1 * KH * KW),
        "conv2_b": u(ks[3], (C2,), C1 * KH * KW),
        "fc1_w": u(ks[4], (F1, KF1), KF1),
        "fc1_b": u(ks[5], (F1,), KF1),
        "fc2_w": u(ks[6], (N_OUT, F1), F1),
        "fc2_b": u(ks[7], (N_OUT,), F1),
    }


def pack_params(params):
    """One-time re-layout of PyTorch weights into kernel-friendly form."""
    # conv taps -> im2col weights with K ordered (di, dj, cin); pad conv1 Cin to 8.
    w1 = jnp.transpose(params["conv1_w"], (2, 3, 1, 0))          # (3,3,7,32)
    w1 = jnp.pad(w1, ((0, 0), (0, 0), (0, C_INP - C_IN), (0, 0))).reshape(K1, C1)
    w2 = jnp.transpose(params["conv2_w"], (2, 3, 1, 0)).reshape(K2, C2)
    # fc1: torch.flatten(NCHW) orders columns (c, h, w); repack rows spatial-major
    # (h, w, c) so the kernel's NHWC flatten is consumed directly.
    wf1 = params["fc1_w"].reshape(F1, C2, OH2, OW2)
    wf1 = jnp.transpose(wf1, (2, 3, 1, 0)).reshape(KF1, F1)
    return {
        "w1": w1, "b1": params["conv1_b"].reshape(1, C1),
        "w2": w2, "b2": params["conv2_b"].reshape(1, C2),
        "wf1": wf1, "bf1": params["fc1_b"].reshape(1, F1),
        "wf2": params["fc2_w"].T, "bf2": params["fc2_b"].reshape(1, N_OUT),
    }


# ---------------------------------------------------------------------------
# Forward wrapper: NCHW in, (B, 4) Q-values out; one pallas_call, no grid.
# ---------------------------------------------------------------------------
def qnet_forward(packed, x_nchw):
    b = x_nchw.shape[0]
    assert x_nchw.shape[1:] == (C_IN, H_IN, W_IN), x_nchw.shape
    x = jnp.transpose(x_nchw, (0, 2, 3, 1)).astype(jnp.float32)   # NCHW -> NHWC
    x = jnp.pad(x, ((0, 0), (0, 0), (0, 0), (0, C_INP - C_IN)))   # Cin 7 -> 8

    vmem = lambda: pl.BlockSpec(memory_space=pltpu.MemorySpace.VMEM)
    return pl.pallas_call(
        _qnet_fused_kernel,
        out_shape=jax.ShapeDtypeStruct((b, N_OUT), jnp.float32),
        in_specs=[vmem(), vmem(), vmem(), vmem(), vmem(),
                  pl.BlockSpec(memory_space=pl.ANY),      # fc1 weight stays in HBM
                  vmem(), vmem(), vmem()],
        out_specs=vmem(),
        scratch_shapes=[
            pltpu.VMEM((KF1, F1), jnp.float32),           # fc1 weight landing buffer
            pltpu.SemaphoreType.DMA,                      # its DMA semaphore
        ],
    )(x, packed["w1"], packed["b1"], packed["w2"], packed["b2"],
      packed["wf1"], packed["bf1"], packed["wf2"], packed["bf2"])


# ---------------------------------------------------------------------------
# Plain-JAX reference mirroring the PyTorch module (fp32 "ground truth").
# ---------------------------------------------------------------------------
def qnet_reference(params, x_nchw):
    P = jax.lax.Precision.HIGHEST

    def conv_valid(x_nhwc, w_oihw, bias):
        co, ci, kh, kw = w_oihw.shape
        n, h, w, _ = x_nhwc.shape
        oh, ow = h - kh + 1, w - kw + 1
        cols = [x_nhwc[:, i:i + oh, j:j + ow, :]
                for i in range(kh) for j in range(kw)]
        patches = jnp.concatenate(cols, axis=-1).reshape(n * oh * ow, kh * kw * ci)
        wmat = jnp.transpose(w_oihw, (2, 3, 1, 0)).reshape(kh * kw * ci, co)
        return (jnp.dot(patches, wmat, precision=P) + bias).reshape(n, oh, ow, co)

    x = jnp.transpose(x_nchw, (0, 2, 3, 1))
    h1 = jax.nn.relu(conv_valid(x, params["conv1_w"], params["conv1_b"]))
    h2 = jax.nn.relu(conv_valid(h1, params["conv2_w"], params["conv2_b"]))
    flat = jnp.transpose(h2, (0, 3, 1, 2)).reshape(x.shape[0], -1)  # torch.flatten
    h3 = jax.nn.relu(jnp.dot(flat, params["fc1_w"].T, precision=P) + params["fc1_b"])
    return jnp.dot(h3, params["fc2_w"].T, precision=P) + params["fc2_b"]


if __name__ == "__main__":
    key = jax.random.PRNGKey(0)
    pkey, xkey = jax.random.split(key)
    params = init_params(pkey)          # PyTorch-layout parameters
    packed = pack_params(params)        # one-time kernel-layout packing

    # Input: NCHW, 7 channels, 9x10 spatial -> 64*5*6 = 1920 flat features.
    x = jax.random.normal(xkey, (B, C_IN, H_IN, W_IN), dtype=jnp.float32)

    fwd = jax.jit(qnet_forward)
    q = jax.block_until_ready(fwd(packed, x))
    assert q.shape == (B, N_OUT) and q.dtype == jnp.float32

    # Kernel matmuls run at default MXU precision (f32 accumulation); compare
    # against the fp32-precision reference with a matching tolerance.
    ref = qnet_reference(params, x)
    max_err = float(jnp.max(jnp.abs(q - ref)))
    tol = 2e-2 * max(1.0, float(jnp.max(jnp.abs(ref))))
    assert max_err < tol, f"mismatch vs reference: {max_err} (tol {tol})"
    print("KERNEL_OK")
</pallas_src>

<mosaic_0001>
module attributes {stable_mosaic.version = 11 : i64} {
  func.func @_qnet_fused_kernel(%arg0: memref<2x9x10x8xf32, #tpu.memory_space<vmem>>, %arg1: memref<72x32xf32, #tpu.memory_space<vmem>>, %arg2: memref<1x32xf32, #tpu.memory_space<vmem>>, %arg3: memref<288x64xf32, #tpu.memory_space<vmem>>, %arg4: memref<1x64xf32, #tpu.memory_space<vmem>>, %arg5: memref<1920x128xf32, #tpu.memory_space<any>>, %arg6: memref<1x128xf32, #tpu.memory_space<vmem>>, %arg7: memref<128x4xf32, #tpu.memory_space<vmem>>, %arg8: memref<1x4xf32, #tpu.memory_space<vmem>>, %arg9: memref<2x4xf32, #tpu.memory_space<vmem>>, %arg10: memref<1920x128xf32, #tpu.memory_space<vmem>>, %arg11: memref<!tpu.dma_semaphore, #tpu.memory_space<semaphore_mem>>) attributes {dimension_semantics = [], scalar_prefetch = 0 : i64, scratch_operands = 2 : i64, tpu.core_type = #tpu.core_type<tc>} {
    tpu.enqueue_dma source(%arg5 : memref<1920x128xf32, #tpu.memory_space<any>>) target(%arg10 : memref<1920x128xf32, #tpu.memory_space<vmem>>) target_semaphore(%arg11 : memref<!tpu.dma_semaphore, #tpu.memory_space<semaphore_mem>>)
    %c0 = arith.constant 0 : index
    %c0_0 = arith.constant 0 : index
    %c0_1 = arith.constant 0 : index
    %c0_2 = arith.constant 0 : index
    %0 = vector.load %arg0[%c0, %c0_0, %c0_1, %c0_2] : memref<2x9x10x8xf32, #tpu.memory_space<vmem>>, vector<2x9x10x8xf32>
    %1 = vector.extract_strided_slice %0 {offsets = [0, 0, 0, 0], sizes = [2, 9, 8, 8], strides = [1, 1, 1, 1]} : vector<2x9x10x8xf32> to vector<2x9x8x8xf32>
    %2 = vector.extract_strided_slice %0 {offsets = [0, 0, 1, 0], sizes = [2, 9, 8, 8], strides = [1, 1, 1, 1]} : vector<2x9x10x8xf32> to vector<2x9x8x8xf32>
    %3 = vector.extract_strided_slice %0 {offsets = [0, 0, 2, 0], sizes = [2, 9, 8, 8], strides = [1, 1, 1, 1]} : vector<2x9x10x8xf32> to vector<2x9x8x8xf32>
    %4 = vector.extract_strided_slice %1 {offsets = [0, 0, 0, 0], sizes = [2, 7, 8, 8], strides = [1, 1, 1, 1]} : vector<2x9x8x8xf32> to vector<2x7x8x8xf32>
    %5 = vector.extract_strided_slice %2 {offsets = [0, 0, 0, 0], sizes = [2, 7, 8, 8], strides = [1, 1, 1, 1]} : vector<2x9x8x8xf32> to vector<2x7x8x8xf32>
    %6 = vector.extract_strided_slice %3 {offsets = [0, 0, 0, 0], sizes = [2, 7, 8, 8], strides = [1, 1, 1, 1]} : vector<2x9x8x8xf32> to vector<2x7x8x8xf32>
    %7 = vector.extract_strided_slice %1 {offsets = [0, 1, 0, 0], sizes = [2, 7, 8, 8], strides = [1, 1, 1, 1]} : vector<2x9x8x8xf32> to vector<2x7x8x8xf32>
    %8 = vector.extract_strided_slice %2 {offsets = [0, 1, 0, 0], sizes = [2, 7, 8, 8], strides = [1, 1, 1, 1]} : vector<2x9x8x8xf32> to vector<2x7x8x8xf32>
    %9 = vector.extract_strided_slice %3 {offsets = [0, 1, 0, 0], sizes = [2, 7, 8, 8], strides = [1, 1, 1, 1]} : vector<2x9x8x8xf32> to vector<2x7x8x8xf32>
    %10 = vector.extract_strided_slice %1 {offsets = [0, 2, 0, 0], sizes = [2, 7, 8, 8], strides = [1, 1, 1, 1]} : vector<2x9x8x8xf32> to vector<2x7x8x8xf32>
    %11 = vector.extract_strided_slice %2 {offsets = [0, 2, 0, 0], sizes = [2, 7, 8, 8], strides = [1, 1, 1, 1]} : vector<2x9x8x8xf32> to vector<2x7x8x8xf32>
    %12 = vector.extract_strided_slice %3 {offsets = [0, 2, 0, 0], sizes = [2, 7, 8, 8], strides = [1, 1, 1, 1]} : vector<2x9x8x8xf32> to vector<2x7x8x8xf32>
    %13 = tpu.concatenate %4, %5, %6, %7, %8, %9, %10, %11, %12 in 3 : vector<2x7x8x8xf32>, vector<2x7x8x8xf32>, vector<2x7x8x8xf32>, vector<2x7x8x8xf32>, vector<2x7x8x8xf32>, vector<2x7x8x8xf32>, vector<2x7x8x8xf32>, vector<2x7x8x8xf32>, vector<2x7x8x8xf32> -> vector<2x7x8x72xf32>
    %14 = vector.shape_cast %13 : vector<2x7x8x72xf32> to vector<112x72xf32>
    %c0_3 = arith.constant 0 : index
    %c0_4 = arith.constant 0 : index
    %15 = vector.load %arg1[%c0_3, %c0_4] : memref<72x32xf32, #tpu.memory_space<vmem>>, vector<72x32xf32>
    %cst = arith.constant dense<0.000000e+00> : vector<112x32xf32>
    %16 = tpu.matmul %14, %15, %cst {dimension_numbers = #tpu.dot_dimension_numbers<[1], [0], [0], [1], [0, 0, 1, 1], [], []>} : vector<112x72xf32>, vector<72x32xf32>, vector<112x32xf32> -> vector<112x32xf32>
    %c0_5 = arith.constant 0 : index
    %c0_6 = arith.constant 0 : index
    %17 = vector.load %arg2[%c0_5, %c0_6] : memref<1x32xf32, #tpu.memory_space<vmem>>, vector<1x32xf32>
    %18 = vector.broadcast %17 : vector<1x32xf32> to vector<112x32xf32>
    %19 = arith.addf %16, %18 : vector<112x32xf32>
    %cst_7 = arith.constant 0.000000e+00 : f32
    %20 = vector.broadcast %cst_7 : f32 to vector<112x32xf32>
    %21 = arith.maximumf %19, %20 : vector<112x32xf32>
    %22 = vector.shape_cast %21 : vector<112x32xf32> to vector<2x7x8x32xf32>
    %cst_8 = arith.constant 0.000000e+00 : f32
    %23 = vector.broadcast %cst_8 : f32 to vector<2x7x8x32xf32>
    %24 = tpu.concatenate %22, %23 in 2 : vector<2x7x8x32xf32>, vector<2x7x8x32xf32> -> vector<2x7x16x32xf32>
    %25 = vector.extract_strided_slice %24 {offsets = [0, 0, 0, 0], sizes = [2, 7, 8, 32], strides = [1, 1, 1, 1]} : vector<2x7x16x32xf32> to vector<2x7x8x32xf32>
    %26 = vector.extract_strided_slice %24 {offsets = [0, 0, 1, 0], sizes = [2, 7, 8, 32], strides = [1, 1, 1, 1]} : vector<2x7x16x32xf32> to vector<2x7x8x32xf32>
    %27 = vector.extract_strided_slice %24 {offsets = [0, 0, 2, 0], sizes = [2, 7, 8, 32], strides = [1, 1, 1, 1]} : vector<2x7x16x32xf32> to vector<2x7x8x32xf32>
    %28 = vector.extract_strided_slice %25 {offsets = [0, 0, 0, 0], sizes = [2, 5, 8, 32], strides = [1, 1, 1, 1]} : vector<2x7x8x32xf32> to vector<2x5x8x32xf32>
    %29 = vector.extract_strided_slice %26 {offsets = [0, 0, 0, 0], sizes = [2, 5, 8, 32], strides = [1, 1, 1, 1]} : vector<2x7x8x32xf32> to vector<2x5x8x32xf32>
    %30 = vector.extract_strided_slice %27 {offsets = [0, 0, 0, 0], sizes = [2, 5, 8, 32], strides = [1, 1, 1, 1]} : vector<2x7x8x32xf32> to vector<2x5x8x32xf32>
    %31 = vector.extract_strided_slice %25 {offsets = [0, 1, 0, 0], sizes = [2, 5, 8, 32], strides = [1, 1, 1, 1]} : vector<2x7x8x32xf32> to vector<2x5x8x32xf32>
    %32 = vector.extract_strided_slice %26 {offsets = [0, 1, 0, 0], sizes = [2, 5, 8, 32], strides = [1, 1, 1, 1]} : vector<2x7x8x32xf32> to vector<2x5x8x32xf32>
    %33 = vector.extract_strided_slice %27 {offsets = [0, 1, 0, 0], sizes = [2, 5, 8, 32], strides = [1, 1, 1, 1]} : vector<2x7x8x32xf32> to vector<2x5x8x32xf32>
    %34 = vector.extract_strided_slice %25 {offsets = [0, 2, 0, 0], sizes = [2, 5, 8, 32], strides = [1, 1, 1, 1]} : vector<2x7x8x32xf32> to vector<2x5x8x32xf32>
    %35 = vector.extract_strided_slice %26 {offsets = [0, 2, 0, 0], sizes = [2, 5, 8, 32], strides = [1, 1, 1, 1]} : vector<2x7x8x32xf32> to vector<2x5x8x32xf32>
    %36 = vector.extract_strided_slice %27 {offsets = [0, 2, 0, 0], sizes = [2, 5, 8, 32], strides = [1, 1, 1, 1]} : vector<2x7x8x32xf32> to vector<2x5x8x32xf32>
    %37 = tpu.concatenate %28, %29, %30, %31, %32, %33, %34, %35, %36 in 3 : vector<2x5x8x32xf32>, vector<2x5x8x32xf32>, vector<2x5x8x32xf32>, vector<2x5x8x32xf32>, vector<2x5x8x32xf32>, vector<2x5x8x32xf32>, vector<2x5x8x32xf32>, vector<2x5x8x32xf32>, vector<2x5x8x32xf32> -> vector<2x5x8x288xf32>
    %38 = vector.shape_cast %37 : vector<2x5x8x288xf32> to vector<80x288xf32>
    %c0_9 = arith.constant 0 : index
    %c0_10 = arith.constant 0 : index
    %39 = vector.load %arg3[%c0_9, %c0_10] : memref<288x64xf32, #tpu.memory_space<vmem>>, vector<288x64xf32>
    %cst_11 = arith.constant dense<0.000000e+00> : vector<80x64xf32>
    %40 = tpu.matmul %38, %39, %cst_11 {dimension_numbers = #tpu.dot_dimension_numbers<[1], [0], [0], [1], [0, 0, 1, 1], [], []>} : vector<80x288xf32>, vector<288x64xf32>, vector<80x64xf32> -> vector<80x64xf32>
    %c0_12 = arith.constant 0 : index
    %c0_13 = arith.constant 0 : index
    %41 = vector.load %arg4[%c0_12, %c0_13] : memref<1x64xf32, #tpu.memory_space<vmem>>, vector<1x64xf32>
    %42 = vector.broadcast %41 : vector<1x64xf32> to vector<80x64xf32>
    %43 = arith.addf %40, %42 : vector<80x64xf32>
    %cst_14 = arith.constant 0.000000e+00 : f32
    %44 = vector.broadcast %cst_14 : f32 to vector<80x64xf32>
    %45 = arith.maximumf %43, %44 : vector<80x64xf32>
    %46 = vector.shape_cast %45 : vector<80x64xf32> to vector<2x40x64xf32>
    %47 = vector.extract_strided_slice %46 {offsets = [0, 0, 0], sizes = [2, 1, 64], strides = [1, 1, 1]} : vector<2x40x64xf32> to vector<2x1x64xf32>
    %48 = vector.shape_cast %47 : vector<2x1x64xf32> to vector<2x64xf32>
    %49 = vector.extract_strided_slice %46 {offsets = [0, 1, 0], sizes = [2, 1, 64], strides = [1, 1, 1]} : vector<2x40x64xf32> to vector<2x1x64xf32>
    %50 = vector.shape_cast %49 : vector<2x1x64xf32> to vector<2x64xf32>
    %51 = vector.extract_strided_slice %46 {offsets = [0, 2, 0], sizes = [2, 1, 64], strides = [1, 1, 1]} : vector<2x40x64xf32> to vector<2x1x64xf32>
    %52 = vector.shape_cast %51 : vector<2x1x64xf32> to vector<2x64xf32>
    %53 = vector.extract_strided_slice %46 {offsets = [0, 3, 0], sizes = [2, 1, 64], strides = [1, 1, 1]} : vector<2x40x64xf32> to vector<2x1x64xf32>
    %54 = vector.shape_cast %53 : vector<2x1x64xf32> to vector<2x64xf32>
    %55 = vector.extract_strided_slice %46 {offsets = [0, 4, 0], sizes = [2, 1, 64], strides = [1, 1, 1]} : vector<2x40x64xf32> to vector<2x1x64xf32>
    %56 = vector.shape_cast %55 : vector<2x1x64xf32> to vector<2x64xf32>
    %57 = vector.extract_strided_slice %46 {offsets = [0, 5, 0], sizes = [2, 1, 64], strides = [1, 1, 1]} : vector<2x40x64xf32> to vector<2x1x64xf32>
    %58 = vector.shape_cast %57 : vector<2x1x64xf32> to vector<2x64xf32>
    %59 = vector.extract_strided_slice %46 {offsets = [0, 8, 0], sizes = [2, 1, 64], strides = [1, 1, 1]} : vector<2x40x64xf32> to vector<2x1x64xf32>
    %60 = vector.shape_cast %59 : vector<2x1x64xf32> to vector<2x64xf32>
    %61 = vector.extract_strided_slice %46 {offsets = [0, 9, 0], sizes = [2, 1, 64], strides = [1, 1, 1]} : vector<2x40x64xf32> to vector<2x1x64xf32>
    %62 = vector.shape_cast %61 : vector<2x1x64xf32> to vector<2x64xf32>
    %63 = vector.extract_strided_slice %46 {offsets = [0, 10, 0], sizes = [2, 1, 64], strides = [1, 1, 1]} : vector<2x40x64xf32> to vector<2x1x64xf32>
    %64 = vector.shape_cast %63 : vector<2x1x64xf32> to vector<2x64xf32>
    %65 = vector.extract_strided_slice %46 {offsets = [0, 11, 0], sizes = [2, 1, 64], strides = [1, 1, 1]} : vector<2x40x64xf32> to vector<2x1x64xf32>
    %66 = vector.shape_cast %65 : vector<2x1x64xf32> to vector<2x64xf32>
    %67 = vector.extract_strided_slice %46 {offsets = [0, 12, 0], sizes = [2, 1, 64], strides = [1, 1, 1]} : vector<2x40x64xf32> to vector<2x1x64xf32>
    %68 = vector.shape_cast %67 : vector<2x1x64xf32> to vector<2x64xf32>
    %69 = vector.extract_strided_slice %46 {offsets = [0, 13, 0], sizes = [2, 1, 64], strides = [1, 1, 1]} : vector<2x40x64xf32> to vector<2x1x64xf32>
    %70 = vector.shape_cast %69 : vector<2x1x64xf32> to vector<2x64xf32>
    %71 = vector.extract_strided_slice %46 {offsets = [0, 16, 0], sizes = [2, 1, 64], strides = [1, 1, 1]} : vector<2x40x64xf32> to vector<2x1x64xf32>
    %72 = vector.shape_cast %71 : vector<2x1x64xf32> to vector<2x64xf32>
    %73 = vector.extract_strided_slice %46 {offsets = [0, 17, 0], sizes = [2, 1, 64], strides = [1, 1, 1]} : vector<2x40x64xf32> to vector<2x1x64xf32>
    %74 = vector.shape_cast %73 : vector<2x1x64xf32> to vector<2x64xf32>
    %75 = vector.extract_strided_slice %46 {offsets = [0, 18, 0], sizes = [2, 1, 64], strides = [1, 1, 1]} : vector<2x40x64xf32> to vector<2x1x64xf32>
    %76 = vector.shape_cast %75 : vector<2x1x64xf32> to vector<2x64xf32>
    %77 = vector.extract_strided_slice %46 {offsets = [0, 19, 0], sizes = [2, 1, 64], strides = [1, 1, 1]} : vector<2x40x64xf32> to vector<2x1x64xf32>
    %78 = vector.shape_cast %77 : vector<2x1x64xf32> to vector<2x64xf32>
    %79 = vector.extract_strided_slice %46 {offsets = [0, 20, 0], sizes = [2, 1, 64], strides = [1, 1, 1]} : vector<2x40x64xf32> to vector<2x1x64xf32>
    %80 = vector.shape_cast %79 : vector<2x1x64xf32> to vector<2x64xf32>
    %81 = vector.extract_strided_slice %46 {offsets = [0, 21, 0], sizes = [2, 1, 64], strides = [1, 1, 1]} : vector<2x40x64xf32> to vector<2x1x64xf32>
    %82 = vector.shape_cast %81 : vector<2x1x64xf32> to vector<2x64xf32>
    %83 = vector.extract_strided_slice %46 {offsets = [0, 24, 0], sizes = [2, 1, 64], strides = [1, 1, 1]} : vector<2x40x64xf32> to vector<2x1x64xf32>
    %84 = vector.shape_cast %83 : vector<2x1x64xf32> to vector<2x64xf32>
    %85 = vector.extract_strided_slice %46 {offsets = [0, 25, 0], sizes = [2, 1, 64], strides = [1, 1, 1]} : vector<2x40x64xf32> to vector<2x1x64xf32>
    %86 = vector.shape_cast %85 : vector<2x1x64xf32> to vector<2x64xf32>
    %87 = vector.extract_strided_slice %46 {offsets = [0, 26, 0], sizes = [2, 1, 64], strides = [1, 1, 1]} : vector<2x40x64xf32> to vector<2x1x64xf32>
    %88 = vector.shape_cast %87 : vector<2x1x64xf32> to vector<2x64xf32>
    %89 = vector.extract_strided_slice %46 {offsets = [0, 27, 0], sizes = [2, 1, 64], strides = [1, 1, 1]} : vector<2x40x64xf32> to vector<2x1x64xf32>
    %90 = vector.shape_cast %89 : vector<2x1x64xf32> to vector<2x64xf32>
    %91 = vector.extract_strided_slice %46 {offsets = [0, 28, 0], sizes = [2, 1, 64], strides = [1, 1, 1]} : vector<2x40x64xf32> to vector<2x1x64xf32>
    %92 = vector.shape_cast %91 : vector<2x1x64xf32> to vector<2x64xf32>
    %93 = vector.extract_strided_slice %46 {offsets = [0, 29, 0], sizes = [2, 1, 64], strides = [1, 1, 1]} : vector<2x40x64xf32> to vector<2x1x64xf32>
    %94 = vector.shape_cast %93 : vector<2x1x64xf32> to vector<2x64xf32>
    %95 = vector.extract_strided_slice %46 {offsets = [0, 32, 0], sizes = [2, 1, 64], strides = [1, 1, 1]} : vector<2x40x64xf32> to vector<2x1x64xf32>
    %96 = vector.shape_cast %95 : vector<2x1x64xf32> to vector<2x64xf32>
    %97 = vector.extract_strided_slice %46 {offsets = [0, 33, 0], sizes = [2, 1, 64], strides = [1, 1, 1]} : vector<2x40x64xf32> to vector<2x1x64xf32>
    %98 = vector.shape_cast %97 : vector<2x1x64xf32> to vector<2x64xf32>
    %99 = vector.extract_strided_slice %46 {offsets = [0, 34, 0], sizes = [2, 1, 64], strides = [1, 1, 1]} : vector<2x40x64xf32> to vector<2x1x64xf32>
    %100 = vector.shape_cast %99 : vector<2x1x64xf32> to vector<2x64xf32>
    %101 = vector.extract_strided_slice %46 {offsets = [0, 35, 0], sizes = [2, 1, 64], strides = [1, 1, 1]} : vector<2x40x64xf32> to vector<2x1x64xf32>
    %102 = vector.shape_cast %101 : vector<2x1x64xf32> to vector<2x64xf32>
    %103 = vector.extract_strided_slice %46 {offsets = [0, 36, 0], sizes = [2, 1, 64], strides = [1, 1, 1]} : vector<2x40x64xf32> to vector<2x1x64xf32>
    %104 = vector.shape_cast %103 : vector<2x1x64xf32> to vector<2x64xf32>
    %105 = vector.extract_strided_slice %46 {offsets = [0, 37, 0], sizes = [2, 1, 64], strides = [1, 1, 1]} : vector<2x40x64xf32> to vector<2x1x64xf32>
    %106 = vector.shape_cast %105 : vector<2x1x64xf32> to vector<2x64xf32>
    %107 = tpu.concatenate %48, %50, %52, %54, %56, %58, %60, %62, %64, %66, %68, %70, %72, %74, %76, %78 in 1 : vector<2x64xf32>, vector<2x64xf32>, vector<2x64xf32>, vector<2x64xf32>, vector<2x64xf32>, vector<2x64xf32>, vector<2x64xf32>, vector<2x64xf32>, vector<2x64xf32>, vector<2x64xf32>, vector<2x64xf32>, vector<2x64xf32>, vector<2x64xf32>, vector<2x64xf32>, vector<2x64xf32>, vector<2x64xf32> -> vector<2x1024xf32>
    %108 = tpu.concatenate %80, %82, %84, %86, %88, %90, %92, %94, %96, %98, %100, %102, %104, %106 in 1 : vector<2x64xf32>, vector<2x64xf32>, vector<2x64xf32>, vector<2x64xf32>, vector<2x64xf32>, vector<2x64xf32>, vector<2x64xf32>, vector<2x64xf32>, vector<2x64xf32>, vector<2x64xf32>, vector<2x64xf32>, vector<2x64xf32>, vector<2x64xf32>, vector<2x64xf32> -> vector<2x896xf32>
    %109 = tpu.concatenate %107, %108 in 1 : vector<2x1024xf32>, vector<2x896xf32> -> vector<2x1920xf32>
    tpu.wait_dma2 semaphore(%arg11 : memref<!tpu.dma_semaphore, #tpu.memory_space<semaphore_mem>>) src(%arg5 : memref<1920x128xf32, #tpu.memory_space<any>>) dst(%arg10 : memref<1920x128xf32, #tpu.memory_space<vmem>>)
    %c0_15 = arith.constant 0 : index
    %c0_16 = arith.constant 0 : index
    %110 = vector.load %arg10[%c0_15, %c0_16] : memref<1920x128xf32, #tpu.memory_space<vmem>>, vector<1920x128xf32>
    %cst_17 = arith.constant dense<0.000000e+00> : vector<2x128xf32>
    %111 = tpu.matmul %109, %110, %cst_17 {dimension_numbers = #tpu.dot_dimension_numbers<[1], [0], [0], [1], [0, 0, 1, 1], [], []>} : vector<2x1920xf32>, vector<1920x128xf32>, vector<2x128xf32> -> vector<2x128xf32>
    %c0_18 = arith.constant 0 : index
    %c0_19 = arith.constant 0 : index
    %112 = vector.load %arg6[%c0_18, %c0_19] : memref<1x128xf32, #tpu.memory_space<vmem>>, vector<1x128xf32>
    %113 = vector.broadcast %112 : vector<1x128xf32> to vector<2x128xf32>
    %114 = arith.addf %111, %113 : vector<2x128xf32>
    %cst_20 = arith.constant 0.000000e+00 : f32
    %115 = vector.broadcast %cst_20 : f32 to vector<2x128xf32>
    %116 = arith.maximumf %114, %115 : vector<2x128xf32>
    %c0_21 = arith.constant 0 : index
    %c0_22 = arith.constant 0 : index
    %117 = vector.load %arg7[%c0_21, %c0_22] : memref<128x4xf32, #tpu.memory_space<vmem>>, vector<128x4xf32>
    %cst_23 = arith.constant dense<0.000000e+00> : vector<2x4xf32>
    %118 = tpu.matmul %116, %117, %cst_23 {dimension_numbers = #tpu.dot_dimension_numbers<[1], [0], [0], [1], [0, 0, 1, 1], [], []>} : vector<2x128xf32>, vector<128x4xf32>, vector<2x4xf32> -> vector<2x4xf32>
    %c0_24 = arith.constant 0 : index
    %c0_25 = arith.constant 0 : index
    %119 = vector.load %arg8[%c0_24, %c0_25] : memref<1x4xf32, #tpu.memory_space<vmem>>, vector<1x4xf32>
    %120 = vector.broadcast %119 : vector<1x4xf32> to vector<2x4xf32>
    %121 = arith.addf %118, %120 : vector<2x4xf32>
    %c0_26 = arith.constant 0 : index
    %c0_27 = arith.constant 0 : index
    %122 = vector.load %arg9[%c0_26, %c0_27] : memref<2x4xf32, #tpu.memory_space<vmem>>, vector<2x4xf32>
    tpu.vector_store %arg9[%c0_26, %c0_27], %121 {strides = array<i32>} : memref<2x4xf32, #tpu.memory_space<vmem>>, vector<2x4xf32>,
    return
  }
}

</mosaic_0001>

<llo_original>
// kernel: qnet_forward.1
$region0: #{qnet_forward.1}
  #allocation0 [shape = 'u32[]', space=smem, size = 0x4, offset = 0x4, fixed_abs, tag = 'smem constant byte address 0x4 - core index']
  #allocation1 [shape = 'u32[72,128]{1,0:T(1,128)}', space=vmem, size = 0x9000, scoped, tag = 'internal scratch']
  #allocation2 [shape = 'f32[1920,128]{1,0:T(8,128)}', space=vmem, size = 0xf0000, scoped, tag = 'scratch operand']
  #allocation3 [shape = 's32[1]{0}', space=sflag, size = 0x4, scoped, tag = 'scratch operand']
  #allocation6 [shape = 's32[]', space=sflag, size = 0x4, offset = 0, fixed_abs, tag = 'sflag constant byte address 0x0 - dummy sync flag']
  #allocation7 [shape = 's32[]', space=sflag, size = 0x4, offset = 0, fixed_abs, tag = 'sflag constant byte address 0x0 - dummy sync flag']
  #allocation8 [shape = 'u32[]', space=smem, size = 0x4, offset = 0x44, fixed_abs, tag = 'smem constant byte address 0x44 - assertion arg 0']
  #allocation9 [shape = 'u32[]', space=smem, size = 0x4, offset = 0x48, fixed_abs, tag = 'smem constant byte address 0x48 - assertion arg 1']
  %s0 = inlined_call_operand.vmem [shape: f32[2,9,10,8], index: 0, kind: input, shape index: {}]
  %s1 = inlined_call_operand.vmem [shape: f32[72,32], index: 1, kind: input, shape index: {}]
  %s2 = inlined_call_operand.vmem [shape: f32[1,32], index: 2, kind: input, shape index: {}]
  %s3 = inlined_call_operand.vmem [shape: f32[288,64], index: 3, kind: input, shape index: {}]
  %s4 = inlined_call_operand.vmem [shape: f32[1,64], index: 4, kind: input, shape index: {}]
  %s5 = inlined_call_operand.hbm [shape: f32[1920,128], index: 5, kind: input, shape index: {}]
  %s6 = inlined_call_operand.vmem [shape: f32[1,128], index: 6, kind: input, shape index: {}]
  %s7 = inlined_call_operand.vmem [shape: f32[128,4], index: 7, kind: input, shape index: {}]
  %s8 = inlined_call_operand.vmem [shape: f32[1,4], index: 8, kind: input, shape index: {}]
  %s9 = inlined_call_operand.hbm [shape: f32[2,4], index: 9, kind: output, shape index: {}]
  %s10 = sld [smem:[#allocation0]]
  $region46: #{qnet_forward.1} parent=0
    _
  %s12 = ssub.s32 1, %s10
  %s13 = scalar_select 0, %s12, %s10
  $region1: #{qnet_forward.1} parent=0
    #allocation4 [shape = 'u8[1024]{0}', space=vmem, size = 0x400, scoped, tag = 'output window, operand 0, single buffered']
    #allocation5 [shape = 's32[1]{0}', space=sflag, size = 0x4, scoped, tag = 'scoped memory for qnet_forward.1']
    %14 = vsyncpa [#allocation5], 0
    // Predicated region
    $region2: #{qnet_forward.1} parent=1 // pred_check
      _
    $region3: #{qnet_forward.1} parent=1 // pred_check_branch
      %16 = sbr.rel (0) target = $region5
    $region4: #{qnet_forward.1} parent=1 // pred_region
      _
    $region5: #{qnet_forward.1} parent=1 // pred_fallthru
      _
    // Predicated region
    $region6: #{qnet_forward.1} parent=1 // pred_check
      _
    $region7: #{qnet_forward.1} parent=1 // pred_check_branch
      %18 = sbr.rel (0) target = $region9
    $region8: #{qnet_forward.1} parent=1 // pred_region
      _
    $region9: #{qnet_forward.1} parent=1 // pred_fallthru
      _
    // Predicated region
    $region10: #{qnet_forward.1} parent=1 // pred_check
      _
    $region11: #{qnet_forward.1} parent=1 // pred_check_branch
      %20 = sbr.rel (0) target = $region13
    $region12: #{qnet_forward.1} parent=1 // pred_region
      _
    $region13: #{qnet_forward.1} parent=1 // pred_fallthru
      _
    // Predicated region
    $region14: #{qnet_forward.1} parent=1 // pred_check
      _
    $region15: #{qnet_forward.1} parent=1 // pred_check_branch
      %22 = sbr.rel (0) target = $region17
    $region16: #{qnet_forward.1} parent=1 // pred_region
      _
    $region17: #{qnet_forward.1} parent=1 // pred_fallthru
      _
    // Predicated region
    $region18: #{qnet_forward.1} parent=1 // pred_check
      _
    $region19: #{qnet_forward.1} parent=1 // pred_check_branch
      %24 = sbr.rel (0) target = $region21
    $region20: #{qnet_forward.1} parent=1 // pred_region
      _
    $region21: #{qnet_forward.1} parent=1 // pred_fallthru
      _
    // Predicated region
    $region22: #{qnet_forward.1} parent=1 // pred_check
      _
    $region23: #{qnet_forward.1} parent=1 // pred_check_branch
      %26 = sbr.rel (0) target = $region25
    $region24: #{qnet_forward.1} parent=1 // pred_region
      _
    $region25: #{qnet_forward.1} parent=1 // pred_fallthru
      _
    // Predicated region
    $region26: #{qnet_forward.1} parent=1 // pred_check
      _
    $region27: #{qnet_forward.1} parent=1 // pred_check_branch
      %28 = sbr.rel (0) target = $region29
    $region28: #{qnet_forward.1} parent=1 // pred_region
      _
    $region29: #{qnet_forward.1} parent=1 // pred_fallthru
      _
    // Predicated region
    $region30: #{qnet_forward.1} parent=1 // pred_check
      _
    $region31: #{qnet_forward.1} parent=1 // pred_check_branch
      %30 = sbr.rel (0) target = $region33
    $region32: #{qnet_forward.1} parent=1 // pred_region
      _
    $region33: #{qnet_forward.1} parent=1 // pred_fallthru
      _
    // Predicated region
    $region34: #{qnet_forward.1} parent=1 // pred_check
      _
    $region35: #{qnet_forward.1} parent=1 // pred_check_branch
      %32 = sbr.rel target = $region37
    $region36: #{qnet_forward.1} parent=1 // pred_region
      %33 = sst [smem:[#allocation8]] [#allocation7]
      %34 = sst [smem:[#allocation9]] [#allocation6]
    $region37: #{qnet_forward.1} parent=1 // pred_fallthru
      _
    %36 = shalt.err (0)
    %s38 = sshll.u32 %s5, 4
    %s39 = int_to_ptr.hbm [resolvable:$true] %s38
    %s40 = sshll.u32 [#allocation2], 4
    %s41 = int_to_ptr.vmem [resolvable:$true] %s40
    %43 = dma.hbm_to_vmem [thread:$0]  %s39, 30720, %s41, [#allocation3]
    %v44 = vld [vmem:[%s0] sm:$0xff]
    %v45 = vld [vmem:[%s0 + $0x8] sm:$0x3]
    %v46 = vld [vmem:[%s0 + $0x10] sm:$0xff]
    %v47 = vld [vmem:[%s0 + $0x18] sm:$0x3]
    %v48 = vld [vmem:[%s0 + $0x20] sm:$0xff]
    %v49 = vld [vmem:[%s0 + $0x28] sm:$0x3]
    %v50 = vld [vmem:[%s0 + $0x30] sm:$0xff]
    %v51 = vld [vmem:[%s0 + $0x38] sm:$0x3]
    %v52 = vld [vmem:[%s0 + $0x40] sm:$0xff]
    %v53 = vld [vmem:[%s0 + $0x48] sm:$0x3]
    %v54 = vld [vmem:[%s0 + $0x50] sm:$0xff]
    %v55 = vld [vmem:[%s0 + $0x58] sm:$0x3]
    %v56 = vld [vmem:[%s0 + $0x60] sm:$0xff]
    %v57 = vld [vmem:[%s0 + $0x68] sm:$0x3]
    %v58 = vld [vmem:[%s0 + $0x70] sm:$0xff]
    %v59 = vld [vmem:[%s0 + $0x78] sm:$0x3]
    %v60 = vld [vmem:[%s0 + $0x80] sm:$0xff]
    %v61 = vld [vmem:[%s0 + $0x88] sm:$0x3]
    %v62 = vld [vmem:[%s0 + $0x90] sm:$0xff]
    %v63 = vld [vmem:[%s0 + $0x98] sm:$0x3]
    %v64 = vld [vmem:[%s0 + $0xa0] sm:$0xff]
    %v65 = vld [vmem:[%s0 + $0xa8] sm:$0x3]
    %v66 = vld [vmem:[%s0 + $0xb0] sm:$0xff]
    %v67 = vld [vmem:[%s0 + $0xb8] sm:$0x3]
    %v68 = vld [vmem:[%s0 + $0xc0] sm:$0xff]
    %v69 = vld [vmem:[%s0 + $0xc8] sm:$0x3]
    %v70 = vld [vmem:[%s0 + $0xd0] sm:$0xff]
    %v71 = vld [vmem:[%s0 + $0xd8] sm:$0x3]
    %v72 = vld [vmem:[%s0 + $0xe0] sm:$0xff]
    %v73 = vld [vmem:[%s0 + $0xe8] sm:$0x3]
    %v74 = vld [vmem:[%s0 + $0xf0] sm:$0xff]
    %v75 = vld [vmem:[%s0 + $0xf8] sm:$0x3]
    %v76 = vld [vmem:[%s0 + $0x100] sm:$0xff]
    %v77 = vld [vmem:[%s0 + $0x108] sm:$0x3]
    %v78 = vld [vmem:[%s0 + $0x110] sm:$0xff]
    %v79 = vld [vmem:[%s0 + $0x118] sm:$0x3]
    %vm108 = vcmask 1046528
    %v109 = vrot.slane %v44, 1
    %v110 = vrot.slane %v45, 1
    %v111 = vsel %vm108, %v109, %v110
    %v112 = vrot.slane %v46, 1
    %v113 = vrot.slane %v47, 1
    %v114 = vsel %vm108, %v112, %v113
    %v115 = vrot.slane %v48, 1
    %v116 = vrot.slane %v49, 1
    %v117 = vsel %vm108, %v115, %v116
    %v118 = vrot.slane %v50, 1
    %v119 = vrot.slane %v51, 1
    %v120 = vsel %vm108, %v118, %v119
    %v121 = vrot.slane %v52, 1
    %v122 = vrot.slane %v53, 1
    %v123 = vsel %vm108, %v121, %v122
    %v124 = vrot.slane %v54, 1
    %v125 = vrot.slane %v55, 1
    %v126 = vsel %vm108, %v124, %v125
    %v127 = vrot.slane %v56, 1
    %v128 = vrot.slane %v57, 1
    %v129 = vsel %vm108, %v127, %v128
    %v130 = vrot.slane %v62, 1
    %v131 = vrot.slane %v63, 1
    %v132 = vsel %vm108, %v130, %v131
    %v133 = vrot.slane %v64, 1
    %v134 = vrot.slane %v65, 1
    %v135 = vsel %vm108, %v133, %v134
    %v136 = vrot.slane %v66, 1
    %v137 = vrot.slane %v67, 1
    %v138 = vsel %vm108, %v136, %v137
    %v139 = vrot.slane %v68, 1
    %v140 = vrot.slane %v69, 1
    %v141 = vsel %vm108, %v139, %v140
    %v142 = vrot.slane %v70, 1
    %v143 = vrot.slane %v71, 1
    %v144 = vsel %vm108, %v142, %v143
    %v145 = vrot.slane %v72, 1
    %v146 = vrot.slane %v73, 1
    %v147 = vsel %vm108, %v145, %v146
    %v148 = vrot.slane %v74, 1
    %v149 = vrot.slane %v75, 1
    %v150 = vsel %vm108, %v148, %v149
    %151 = vrot.lane.b32.xlu0 %v111, 8
    %v152 = vpop.permute.xlu0 %151
    %153 = vrot.lane.b32.xlu0 %v114, 8
    %v154 = vpop.permute.xlu0 %153
    %155 = vrot.lane.b32.xlu0 %v117, 8
    %v156 = vpop.permute.xlu0 %155
    %157 = vrot.lane.b32.xlu0 %v120, 8
    %v158 = vpop.permute.xlu0 %157
    %159 = vrot.lane.b32.xlu0 %v123, 8
    %v160 = vpop.permute.xlu0 %159
    %161 = vrot.lane.b32.xlu0 %v126, 8
    %v162 = vpop.permute.xlu0 %161
    %163 = vrot.lane.b32.xlu0 %v129, 8
    %v164 = vpop.permute.xlu0 %163
    %165 = vrot.lane.b32.xlu0 %v132, 8
    %v166 = vpop.permute.xlu0 %165
    %167 = vrot.lane.b32.xlu0 %v135, 8
    %v168 = vpop.permute.xlu0 %167
    %169 = vrot.lane.b32.xlu0 %v138, 8
    %v170 = vpop.permute.xlu0 %169
    %171 = vrot.lane.b32.xlu0 %v141, 8
    %v172 = vpop.permute.xlu0 %171
    %173 = vrot.lane.b32.xlu0 %v144, 8
    %v174 = vpop.permute.xlu0 %173
    %175 = vrot.lane.b32.xlu0 %v147, 8
    %v176 = vpop.permute.xlu0 %175
    %177 = vrot.lane.b32.xlu0 %v150, 8
    %v178 = vpop.permute.xlu0 %177
    %vm193 = vcmask 1045504
    %v194 = vrot.slane %v44, 2
    %v195 = vrot.slane %v45, 2
    %v196 = vsel %vm193, %v194, %v195
    %v197 = vrot.slane %v46, 2
    %v198 = vrot.slane %v47, 2
    %v199 = vsel %vm193, %v197, %v198
    %v200 = vrot.slane %v48, 2
    %v201 = vrot.slane %v49, 2
    %v202 = vsel %vm193, %v200, %v201
    %v203 = vrot.slane %v50, 2
    %v204 = vrot.slane %v51, 2
    %v205 = vsel %vm193, %v203, %v204
    %v206 = vrot.slane %v52, 2
    %v207 = vrot.slane %v53, 2
    %v208 = vsel %vm193, %v206, %v207
    %v209 = vrot.slane %v54, 2
    %v210 = vrot.slane %v55, 2
    %v211 = vsel %vm193, %v209, %v210
    %v212 = vrot.slane %v56, 2
    %v213 = vrot.slane %v57, 2
    %v214 = vsel %vm193, %v212, %v213
    %v215 = vrot.slane %v62, 2
    %v216 = vrot.slane %v63, 2
    %v217 = vsel %vm193, %v215, %v216
    %v218 = vrot.slane %v64, 2
    %v219 = vrot.slane %v65, 2
    %v220 = vsel %vm193, %v218, %v219
    %v221 = vrot.slane %v66, 2
    %v222 = vrot.slane %v67, 2
    %v223 = vsel %vm193, %v221, %v222
    %v224 = vrot.slane %v68, 2
    %v225 = vrot.slane %v69, 2
    %v226 = vsel %vm193, %v224, %v225
    %v227 = vrot.slane %v70, 2
    %v228 = vrot.slane %v71, 2
    %v229 = vsel %vm193, %v227, %v228
    %v230 = vrot.slane %v72, 2
    %v231 = vrot.slane %v73, 2
    %v232 = vsel %vm193, %v230, %v231
    %v233 = vrot.slane %v74, 2
    %v234 = vrot.slane %v75, 2
    %v235 = vsel %vm193, %v233, %v234
    %236 = vrot.lane.b32.xlu0 %v196, 16
    %v237 = vpop.permute.xlu0 %236
    %238 = vrot.lane.b32.xlu0 %v199, 16
    %v239 = vpop.permute.xlu0 %238
    %240 = vrot.lane.b32.xlu0 %v202, 16
    %v241 = vpop.permute.xlu0 %240
    %242 = vrot.lane.b32.xlu0 %v205, 16
    %v243 = vpop.permute.xlu0 %242
    %244 = vrot.lane.b32.xlu0 %v208, 16
    %v245 = vpop.permute.xlu0 %244
    %246 = vrot.lane.b32.xlu0 %v211, 16
    %v247 = vpop.permute.xlu0 %246
    %248 = vrot.lane.b32.xlu0 %v214, 16
    %v249 = vpop.permute.xlu0 %248
    %250 = vrot.lane.b32.xlu0 %v217, 16
    %v251 = vpop.permute.xlu0 %250
    %252 = vrot.lane.b32.xlu0 %v220, 16
    %v253 = vpop.permute.xlu0 %252
    %254 = vrot.lane.b32.xlu0 %v223, 16
    %v255 = vpop.permute.xlu0 %254
    %256 = vrot.lane.b32.xlu0 %v226, 16
    %v257 = vpop.permute.xlu0 %256
    %258 = vrot.lane.b32.xlu0 %v229, 16
    %v259 = vpop.permute.xlu0 %258
    %260 = vrot.lane.b32.xlu0 %v232, 16
    %v261 = vpop.permute.xlu0 %260
    %262 = vrot.lane.b32.xlu0 %v235, 16
    %v263 = vpop.permute.xlu0 %262
    %280 = vrot.lane.b32.xlu0 %v46, 24
    %v281 = vpop.permute.xlu0 %280
    %282 = vrot.lane.b32.xlu0 %v48, 24
    %v283 = vpop.permute.xlu0 %282
    %284 = vrot.lane.b32.xlu0 %v50, 24
    %v285 = vpop.permute.xlu0 %284
    %286 = vrot.lane.b32.xlu0 %v52, 24
    %v287 = vpop.permute.xlu0 %286
    %288 = vrot.lane.b32.xlu0 %v54, 24
    %v289 = vpop.permute.xlu0 %288
    %290 = vrot.lane.b32.xlu0 %v56, 24
    %v291 = vpop.permute.xlu0 %290
    %292 = vrot.lane.b32.xlu0 %v58, 24
    %v293 = vpop.permute.xlu0 %292
    %294 = vrot.lane.b32.xlu0 %v64, 24
    %v295 = vpop.permute.xlu0 %294
    %296 = vrot.lane.b32.xlu0 %v66, 24
    %v297 = vpop.permute.xlu0 %296
    %298 = vrot.lane.b32.xlu0 %v68, 24
    %v299 = vpop.permute.xlu0 %298
    %300 = vrot.lane.b32.xlu0 %v70, 24
    %v301 = vpop.permute.xlu0 %300
    %302 = vrot.lane.b32.xlu0 %v72, 24
    %v303 = vpop.permute.xlu0 %302
    %304 = vrot.lane.b32.xlu0 %v74, 24
    %v305 = vpop.permute.xlu0 %304
    %306 = vrot.lane.b32.xlu0 %v76, 24
    %v307 = vpop.permute.xlu0 %306
    %v324 = vrot.slane %v58, 1
    %v325 = vrot.slane %v59, 1
    %v326 = vsel %vm108, %v324, %v325
    %v327 = vrot.slane %v76, 1
    %v328 = vrot.slane %v77, 1
    %v329 = vsel %vm108, %v327, %v328
    %330 = vrot.lane.b32.xlu0 %v114, 32
    %v331 = vpop.permute.xlu0 %330
    %332 = vrot.lane.b32.xlu0 %v117, 32
    %v333 = vpop.permute.xlu0 %332
    %334 = vrot.lane.b32.xlu0 %v120, 32
    %v335 = vpop.permute.xlu0 %334
    %336 = vrot.lane.b32.xlu0 %v123, 32
    %v337 = vpop.permute.xlu0 %336
    %338 = vrot.lane.b32.xlu0 %v126, 32
    %v339 = vpop.permute.xlu0 %338
    %340 = vrot.lane.b32.xlu0 %v129, 32
    %v341 = vpop.permute.xlu0 %340
    %342 = vrot.lane.b32.xlu0 %v326, 32
    %v343 = vpop.permute.xlu0 %342
    %344 = vrot.lane.b32.xlu0 %v135, 32
    %v345 = vpop.permute.xlu0 %344
    %346 = vrot.lane.b32.xlu0 %v138, 32
    %v347 = vpop.permute.xlu0 %346
    %348 = vrot.lane.b32.xlu0 %v141, 32
    %v349 = vpop.permute.xlu0 %348
    %350 = vrot.lane.b32.xlu0 %v144, 32
    %v351 = vpop.permute.xlu0 %350
    %352 = vrot.lane.b32.xlu0 %v147, 32
    %v353 = vpop.permute.xlu0 %352
    %354 = vrot.lane.b32.xlu0 %v150, 32
    %v355 = vpop.permute.xlu0 %354
    %356 = vrot.lane.b32.xlu0 %v329, 32
    %v357 = vpop.permute.xlu0 %356
    %v372 = vrot.slane %v58, 2
    %v373 = vrot.slane %v59, 2
    %v374 = vsel %vm193, %v372, %v373
    %v375 = vrot.slane %v76, 2
    %v376 = vrot.slane %v77, 2
    %v377 = vsel %vm193, %v375, %v376
    %378 = vrot.lane.b32.xlu0 %v199, 40
    %v379 = vpop.permute.xlu0 %378
    %380 = vrot.lane.b32.xlu0 %v202, 40
    %v381 = vpop.permute.xlu0 %380
    %382 = vrot.lane.b32.xlu0 %v205, 40
    %v383 = vpop.permute.xlu0 %382
    %384 = vrot.lane.b32.xlu0 %v208, 40
    %v385 = vpop.permute.xlu0 %384
    %386 = vrot.lane.b32.xlu0 %v211, 40
    %v387 = vpop.permute.xlu0 %386
    %388 = vrot.lane.b32.xlu0 %v214, 40
    %v389 = vpop.permute.xlu0 %388
    %390 = vrot.lane.b32.xlu0 %v374, 40
    %v391 = vpop.permute.xlu0 %390
    %392 = vrot.lane.b32.xlu0 %v220, 40
    %v393 = vpop.permute.xlu0 %392
    %394 = vrot.lane.b32.xlu0 %v223, 40
    %v395 = vpop.permute.xlu0 %394
    %396 = vrot.lane.b32.xlu0 %v226, 40
    %v397 = vpop.permute.xlu0 %396
    %398 = vrot.lane.b32.xlu0 %v229, 40
    %v399 = vpop.permute.xlu0 %398
    %400 = vrot.lane.b32.xlu0 %v232, 40
    %v401 = vpop.permute.xlu0 %400
    %402 = vrot.lane.b32.xlu0 %v235, 40
    %v403 = vpop.permute.xlu0 %402
    %404 = vrot.lane.b32.xlu0 %v377, 40
    %v405 = vpop.permute.xlu0 %404
    %422 = vrot.lane.b32.xlu0 %v48, 48
    %v423 = vpop.permute.xlu0 %422
    %424 = vrot.lane.b32.xlu0 %v50, 48
    %v425 = vpop.permute.xlu0 %424
    %426 = vrot.lane.b32.xlu0 %v52, 48
    %v427 = vpop.permute.xlu0 %426
    %428 = vrot.lane.b32.xlu0 %v54, 48
    %v429 = vpop.permute.xlu0 %428
    %430 = vrot.lane.b32.xlu0 %v56, 48
    %v431 = vpop.permute.xlu0 %430
    %432 = vrot.lane.b32.xlu0 %v58, 48
    %v433 = vpop.permute.xlu0 %432
    %434 = vrot.lane.b32.xlu0 %v60, 48
    %v435 = vpop.permute.xlu0 %434
    %436 = vrot.lane.b32.xlu0 %v66, 48
    %v437 = vpop.permute.xlu0 %436
    %438 = vrot.lane.b32.xlu0 %v68, 48
    %v439 = vpop.permute.xlu0 %438
    %440 = vrot.lane.b32.xlu0 %v70, 48
    %v441 = vpop.permute.xlu0 %440
    %442 = vrot.lane.b32.xlu0 %v72, 48
    %v443 = vpop.permute.xlu0 %442
    %444 = vrot.lane.b32.xlu0 %v74, 48
    %v445 = vpop.permute.xlu0 %444
    %446 = vrot.lane.b32.xlu0 %v76, 48
    %v447 = vpop.permute.xlu0 %446
    %448 = vrot.lane.b32.xlu0 %v78, 48
    %v449 = vpop.permute.xlu0 %448
    %v466 = vrot.slane %v60, 1
    %v467 = vrot.slane %v61, 1
    %v468 = vsel %vm108, %v466, %v467
    %v469 = vrot.slane %v78, 1
    %v470 = vrot.slane %v79, 1
    %v471 = vsel %vm108, %v469, %v470
    %472 = vrot.lane.b32.xlu0 %v117, 56
    %v473 = vpop.permute.xlu0 %472
    %474 = vrot.lane.b32.xlu0 %v120, 56
    %v475 = vpop.permute.xlu0 %474
    %476 = vrot.lane.b32.xlu0 %v123, 56
    %v477 = vpop.permute.xlu0 %476
    %478 = vrot.lane.b32.xlu0 %v126, 56
    %v479 = vpop.permute.xlu0 %478
    %480 = vrot.lane.b32.xlu0 %v129, 56
    %v481 = vpop.permute.xlu0 %480
    %482 = vrot.lane.b32.xlu0 %v326, 56
    %v483 = vpop.permute.xlu0 %482
    %484 = vrot.lane.b32.xlu0 %v468, 56
    %v485 = vpop.permute.xlu0 %484
    %486 = vrot.lane.b32.xlu0 %v138, 56
    %v487 = vpop.permute.xlu0 %486
    %488 = vrot.lane.b32.xlu0 %v141, 56
    %v489 = vpop.permute.xlu0 %488
    %490 = vrot.lane.b32.xlu0 %v144, 56
    %v491 = vpop.permute.xlu0 %490
    %492 = vrot.lane.b32.xlu0 %v147, 56
    %v493 = vpop.permute.xlu0 %492
    %494 = vrot.lane.b32.xlu0 %v150, 56
    %v495 = vpop.permute.xlu0 %494
    %496 = vrot.lane.b32.xlu0 %v329, 56
    %v497 = vpop.permute.xlu0 %496
    %498 = vrot.lane.b32.xlu0 %v471, 56
    %v499 = vpop.permute.xlu0 %498
    %v514 = vrot.slane %v60, 2
    %v515 = vrot.slane %v61, 2
    %v516 = vsel %vm193, %v514, %v515
    %v517 = vrot.slane %v78, 2
    %v518 = vrot.slane %v79, 2
    %v519 = vsel %vm193, %v517, %v518
    %520 = vrot.lane.b32.xlu0 %v202, 64
    %v521 = vpop.permute.xlu0 %520
    %522 = vrot.lane.b32.xlu0 %v205, 64
    %v523 = vpop.permute.xlu0 %522
    %524 = vrot.lane.b32.xlu0 %v208, 64
    %v525 = vpop.permute.xlu0 %524
    %526 = vrot.lane.b32.xlu0 %v211, 64
    %v527 = vpop.permute.xlu0 %526
    %528 = vrot.lane.b32.xlu0 %v214, 64
    %v529 = vpop.permute.xlu0 %528
    %530 = vrot.lane.b32.xlu0 %v374, 64
    %v531 = vpop.permute.xlu0 %530
    %532 = vrot.lane.b32.xlu0 %v516, 64
    %v533 = vpop.permute.xlu0 %532
    %534 = vrot.lane.b32.xlu0 %v223, 64
    %v535 = vpop.permute.xlu0 %534
    %536 = vrot.lane.b32.xlu0 %v226, 64
    %v537 = vpop.permute.xlu0 %536
    %538 = vrot.lane.b32.xlu0 %v229, 64
    %v539 = vpop.permute.xlu0 %538
    %540 = vrot.lane.b32.xlu0 %v232, 64
    %v541 = vpop.permute.xlu0 %540
    %542 = vrot.lane.b32.xlu0 %v235, 64
    %v543 = vpop.permute.xlu0 %542
    %544 = vrot.lane.b32.xlu0 %v377, 64
    %v545 = vpop.permute.xlu0 %544
    %546 = vrot.lane.b32.xlu0 %v519, 64
    %v547 = vpop.permute.xlu0 %546
    %vm562 = vcmask 64512
    %v563 = vsel %vm562, %v44, %v152
    %v564 = vsel %vm562, %v46, %v154
    %v565 = vsel %vm562, %v48, %v156
    %v566 = vsel %vm562, %v50, %v158
    %v567 = vsel %vm562, %v52, %v160
    %v568 = vsel %vm562, %v54, %v162
    %v569 = vsel %vm562, %v56, %v164
    %v570 = vsel %vm562, %v62, %v166
    %v571 = vsel %vm562, %v64, %v168
    %v572 = vsel %vm562, %v66, %v170
    %v573 = vsel %vm562, %v68, %v172
    %v574 = vsel %vm562, %v70, %v174
    %v575 = vsel %vm562, %v72, %v176
    %v576 = vsel %vm562, %v74, %v178
    %vm577 = vcmask 130048
    %v578 = vsel %vm577, %v563, %v237
    %v579 = vsel %vm577, %v564, %v239
    %v580 = vsel %vm577, %v565, %v241
    %v581 = vsel %vm577, %v566, %v243
    %v582 = vsel %vm577, %v567, %v245
    %v583 = vsel %vm577, %v568, %v247
    %v584 = vsel %vm577, %v569, %v249
    %v585 = vsel %vm577, %v570, %v251
    %v586 = vsel %vm577, %v571, %v253
    %v587 = vsel %vm577, %v572, %v255
    %v588 = vsel %vm577, %v573, %v257
    %v589 = vsel %vm577, %v574, %v259
    %v590 = vsel %vm577, %v575, %v261
    %v591 = vsel %vm577, %v576, %v263
    %vm592 = vcmask 195584
    %v593 = vsel %vm592, %v578, %v281
    %v594 = vsel %vm592, %v579, %v283
    %v595 = vsel %vm592, %v580, %v285
    %v596 = vsel %vm592, %v581, %v287
    %v597 = vsel %vm592, %v582, %v289
    %v598 = vsel %vm592, %v583, %v291
    %v599 = vsel %vm592, %v584, %v293
    %v600 = vsel %vm592, %v585, %v295
    %v601 = vsel %vm592, %v586, %v297
    %v602 = vsel %vm592, %v587, %v299
    %v603 = vsel %vm592, %v588, %v301
    %v604 = vsel %vm592, %v589, %v303
    %v605 = vsel %vm592, %v590, %v305
    %v606 = vsel %vm592, %v591, %v307
    %vm607 = vcmask 261120
    %v608 = vsel %vm607, %v593, %v331
    %v609 = vsel %vm607, %v594, %v333
    %v610 = vsel %vm607, %v595, %v335
    %v611 = vsel %vm607, %v596, %v337
    %v612 = vsel %vm607, %v597, %v339
    %v613 = vsel %vm607, %v598, %v341
    %v614 = vsel %vm607, %v599, %v343
    %v615 = vsel %vm607, %v600, %v345
    %v616 = vsel %vm607, %v601, %v347
    %v617 = vsel %vm607, %v602, %v349
    %v618 = vsel %vm607, %v603, %v351
    %v619 = vsel %vm607, %v604, %v353
    %v620 = vsel %vm607, %v605, %v355
    %v621 = vsel %vm607, %v606, %v357
    %vm622 = vcmask 326656
    %v623 = vsel %vm622, %v608, %v379
    %v624 = vsel %vm622, %v609, %v381
    %v625 = vsel %vm622, %v610, %v383
    %v626 = vsel %vm622, %v611, %v385
    %v627 = vsel %vm622, %v612, %v387
    %v628 = vsel %vm622, %v613, %v389
    %v629 = vsel %vm622, %v614, %v391
    %v630 = vsel %vm622, %v615, %v393
    %v631 = vsel %vm622, %v616, %v395
    %v632 = vsel %vm622, %v617, %v397
    %v633 = vsel %vm622, %v618, %v399
    %v634 = vsel %vm622, %v619, %v401
    %v635 = vsel %vm622, %v620, %v403
    %v636 = vsel %vm622, %v621, %v405
    %vm637 = vcmask 392192
    %v638 = vsel %vm637, %v623, %v423
    %v639 = vsel %vm637, %v624, %v425
    %v640 = vsel %vm637, %v625, %v427
    %v641 = vsel %vm637, %v626, %v429
    %v642 = vsel %vm637, %v627, %v431
    %v643 = vsel %vm637, %v628, %v433
    %v644 = vsel %vm637, %v629, %v435
    %v645 = vsel %vm637, %v630, %v437
    %v646 = vsel %vm637, %v631, %v439
    %v647 = vsel %vm637, %v632, %v441
    %v648 = vsel %vm637, %v633, %v443
    %v649 = vsel %vm637, %v634, %v445
    %v650 = vsel %vm637, %v635, %v447
    %v651 = vsel %vm637, %v636, %v449
    %vm652 = vcmask 457728
    %v653 = vsel %vm652, %v638, %v473
    %v654 = vsel %vm652, %v639, %v475
    %v655 = vsel %vm652, %v640, %v477
    %v656 = vsel %vm652, %v641, %v479
    %v657 = vsel %vm652, %v642, %v481
    %v658 = vsel %vm652, %v643, %v483
    %v659 = vsel %vm652, %v644, %v485
    %v660 = vsel %vm652, %v645, %v487
    %v661 = vsel %vm652, %v646, %v489
    %v662 = vsel %vm652, %v647, %v491
    %v663 = vsel %vm652, %v648, %v493
    %v664 = vsel %vm652, %v649, %v495
    %v665 = vsel %vm652, %v650, %v497
    %v666 = vsel %vm652, %v651, %v499
    %vm667 = vcmask 523264
    %v668 = vsel %vm667, %v653, %v521
    %v669 = vsel %vm667, %v654, %v523
    %v670 = vsel %vm667, %v655, %v525
    %v671 = vsel %vm667, %v656, %v527
    %v672 = vsel %vm667, %v657, %v529
    %v673 = vsel %vm667, %v658, %v531
    %v674 = vsel %vm667, %v659, %v533
    %v675 = vsel %vm667, %v660, %v535
    %v676 = vsel %vm667, %v661, %v537
    %v677 = vsel %vm667, %v662, %v539
    %v678 = vsel %vm667, %v663, %v541
    %v679 = vsel %vm667, %v664, %v543
    %v680 = vsel %vm667, %v665, %v545
    %v681 = vsel %vm667, %v666, %v547
    %v682 = vld [vmem:[%s1] sm:$0xff]
    %v683 = vld [vmem:[%s1 + $0x8] sm:$0xff]
    %v684 = vld [vmem:[%s1 + $0x10] sm:$0xff]
    %v685 = vld [vmem:[%s1 + $0x18] sm:$0xff]
    %v686 = vld [vmem:[%s1 + $0x20] sm:$0xff]
    %v687 = vld [vmem:[%s1 + $0x28] sm:$0xff]
    %v688 = vld [vmem:[%s1 + $0x30] sm:$0xff]
    %v689 = vld [vmem:[%s1 + $0x38] sm:$0xff]
    %v690 = vld [vmem:[%s1 + $0x40] sm:$0xff]
    %v691 = vld [vmem:[%s2] sm:$0x1]
    %v693 = vperm.slane %v691, 0
    %vm695 = vcmask 588800
    %v697 = vsel %vm695, %v668, 0
    %v700 = vsel %vm695, %v669, 0
    %v703 = vsel %vm695, %v670, 0
    %v706 = vsel %vm695, %v671, 0
    %v709 = vsel %vm695, %v672, 0
    %v712 = vsel %vm695, %v673, 0
    %v715 = vsel %vm695, %v674, 0
    %v718 = vsel %vm695, %v675, 0
    %v721 = vsel %vm695, %v676, 0
    %v724 = vsel %vm695, %v677, 0
    %v727 = vsel %vm695, %v678, 0
    %v730 = vsel %vm695, %v679, 0
    %v733 = vsel %vm695, %v680, 0
    %v736 = vsel %vm695, %v681, 0
    %738 = vmatpush.msra.mxu0 0.0
    %739 = vmatpush.msra.mxu0 0.0
    %740 = vmatpush.msra.mxu0 0.0
    %741 = vmatpush.msra.mxu0 0.0
    %742 = vmatpush.msra.mxu0 0.0
    %743 = vmatpush.msra.mxu0 0.0
    %744 = vmatpush.msra.mxu0 0.0
    %745 = vmatpush.msra.mxu0 %v690
    %746 = vmatpush.msra.mxu0 %v689
    %747 = vmatpush.msra.mxu0 %v688
    %748 = vmatpush.msra.mxu0 %v687
    %749 = vmatpush.msra.mxu0 %v686
    %750 = vmatpush.msra.mxu0 %v685
    %751 = vmatpush.msra.mxu0 %v684
    %752 = vmatpush.msra.mxu0 %v683
    %753 = vmatpush.msra.mxu0 %v682
    %754 = vmatmul.f32.gmra.mxu0 %v697
    %v755 = vpop.f32.mrf.mxu0
    %v756 = vadd.f32 %v693, %v755
    %757 = vmatmul.f32.gmra.mxu0 %v700
    %v758 = vpop.f32.mrf.mxu0
    %v759 = vadd.f32 %v693, %v758
    %760 = vmatmul.f32.gmra.mxu0 %v703
    %v761 = vpop.f32.mrf.mxu0
    %v762 = vadd.f32 %v693, %v761
    %763 = vmatmul.f32.gmra.mxu0 %v706
    %v764 = vpop.f32.mrf.mxu0
    %v765 = vadd.f32 %v693, %v764
    %766 = vmatmul.f32.gmra.mxu0 %v709
    %v767 = vpop.f32.mrf.mxu0
    %v768 = vadd.f32 %v693, %v767
    %769 = vmatmul.f32.gmra.mxu0 %v712
    %v770 = vpop.f32.mrf.mxu0
    %v771 = vadd.f32 %v693, %v770
    %772 = vmatmul.f32.gmra.mxu0 %v715
    %v773 = vpop.f32.mrf.mxu0
    %v774 = vadd.f32 %v693, %v773
    %775 = vmatmul.f32.gmra.mxu0 %v718
    %v776 = vpop.f32.mrf.mxu0
    %v777 = vadd.f32 %v693, %v776
    %778 = vmatmul.f32.gmra.mxu0 %v721
    %v779 = vpop.f32.mrf.mxu0
    %v780 = vadd.f32 %v693, %v779
    %781 = vmatmul.f32.gmra.mxu0 %v724
    %v782 = vpop.f32.mrf.mxu0
    %v783 = vadd.f32 %v693, %v782
    %784 = vmatmul.f32.gmra.mxu0 %v727
    %v785 = vpop.f32.mrf.mxu0
    %v786 = vadd.f32 %v693, %v785
    %787 = vmatmul.f32.gmra.mxu0 %v730
    %v788 = vpop.f32.mrf.mxu0
    %v789 = vadd.f32 %v693, %v788
    %790 = vmatmul.f32.gmra.mxu0 %v733
    %v791 = vpop.f32.mrf.mxu0
    %v792 = vadd.f32 %v693, %v791
    %793 = vmatmul.f32.gmra.mxu0 %v736
    %v794 = vpop.f32.mrf.mxu0
    %v795 = vadd.f32 %v693, %v794
    %796 = vdwg.mxu0
    %v797 = vmax.f32 %v756, 0.0
    %v798 = vmax.f32 %v759, 0.0
    %v799 = vmax.f32 %v762, 0.0
    %v800 = vmax.f32 %v765, 0.0
    %v801 = vmax.f32 %v768, 0.0
    %v802 = vmax.f32 %v771, 0.0
    %v803 = vmax.f32 %v774, 0.0
    %v804 = vmax.f32 %v777, 0.0
    %v805 = vmax.f32 %v780, 0.0
    %v806 = vmax.f32 %v783, 0.0
    %v807 = vmax.f32 %v786, 0.0
    %v808 = vmax.f32 %v789, 0.0
    %v809 = vmax.f32 %v792, 0.0
    %v810 = vmax.f32 %v795, 0.0
    %v822 = vrot.slane %v797, 1
    %v823 = vrot.slane 0.0, 1
    %v824 = vsel %vm108, %v822, %v823
    %v825 = vrot.slane %v798, 1
    %v826 = vsel %vm108, %v825, %v823
    %v827 = vrot.slane %v799, 1
    %v828 = vsel %vm108, %v827, %v823
    %v829 = vrot.slane %v800, 1
    %v830 = vsel %vm108, %v829, %v823
    %v831 = vrot.slane %v801, 1
    %v832 = vsel %vm108, %v831, %v823
    %v833 = vrot.slane %v804, 1
    %v834 = vsel %vm108, %v833, %v823
    %v835 = vrot.slane %v805, 1
    %v836 = vsel %vm108, %v835, %v823
    %v837 = vrot.slane %v806, 1
    %v838 = vsel %vm108, %v837, %v823
    %v839 = vrot.slane %v807, 1
    %v840 = vsel %vm108, %v839, %v823
    %v841 = vrot.slane %v808, 1
    %v842 = vsel %vm108, %v841, %v823
    %843 = vrot.lane.b32.xlu0 %v824, 32
    %v844 = vpop.permute.xlu0 %843
    %845 = vrot.lane.b32.xlu0 %v826, 32
    %v846 = vpop.permute.xlu0 %845
    %847 = vrot.lane.b32.xlu0 %v828, 32
    %v848 = vpop.permute.xlu0 %847
    %849 = vrot.lane.b32.xlu0 %v830, 32
    %v850 = vpop.permute.xlu0 %849
    %851 = vrot.lane.b32.xlu0 %v832, 32
    %v852 = vpop.permute.xlu0 %851
    %853 = vrot.lane.b32.xlu0 %v834, 32
    %v854 = vpop.permute.xlu0 %853
    %855 = vrot.lane.b32.xlu0 %v836, 32
    %v856 = vpop.permute.xlu0 %855
    %857 = vrot.lane.b32.xlu0 %v838, 32
    %v858 = vpop.permute.xlu0 %857
    %859 = vrot.lane.b32.xlu0 %v840, 32
    %v860 = vpop.permute.xlu0 %859
    %861 = vrot.lane.b32.xlu0 %v842, 32
    %v862 = vpop.permute.xlu0 %861
    %v873 = vrot.slane %v797, 2
    %v874 = vrot.slane 0.0, 2
    %v875 = vsel %vm193, %v873, %v874
    %v876 = vrot.slane %v798, 2
    %v877 = vsel %vm193, %v876, %v874
    %v878 = vrot.slane %v799, 2
    %v879 = vsel %vm193, %v878, %v874
    %v880 = vrot.slane %v800, 2
    %v881 = vsel %vm193, %v880, %v874
    %v882 = vrot.slane %v801, 2
    %v883 = vsel %vm193, %v882, %v874
    %v884 = vrot.slane %v804, 2
    %v885 = vsel %vm193, %v884, %v874
    %v886 = vrot.slane %v805, 2
    %v887 = vsel %vm193, %v886, %v874
    %v888 = vrot.slane %v806, 2
    %v889 = vsel %vm193, %v888, %v874
    %v890 = vrot.slane %v807, 2
    %v891 = vsel %vm193, %v890, %v874
    %v892 = vrot.slane %v808, 2
    %v893 = vsel %vm193, %v892, %v874
    %894 = vrot.lane.b32.xlu0 %v875, 64
    %v895 = vpop.permute.xlu0 %894
    %896 = vrot.lane.b32.xlu0 %v877, 64
    %v897 = vpop.permute.xlu0 %896
    %898 = vrot.lane.b32.xlu0 %v879, 64
    %v899 = vpop.permute.xlu0 %898
    %900 = vrot.lane.b32.xlu0 %v881, 64
    %v901 = vpop.permute.xlu0 %900
    %902 = vrot.lane.b32.xlu0 %v883, 64
    %v903 = vpop.permute.xlu0 %902
    %904 = vrot.lane.b32.xlu0 %v885, 64
    %v905 = vpop.permute.xlu0 %904
    %906 = vrot.lane.b32.xlu0 %v887, 64
    %v907 = vpop.permute.xlu0 %906
    %908 = vrot.lane.b32.xlu0 %v889, 64
    %v909 = vpop.permute.xlu0 %908
    %910 = vrot.lane.b32.xlu0 %v891, 64
    %v911 = vpop.permute.xlu0 %910
    %912 = vrot.lane.b32.xlu0 %v893, 64
    %v913 = vpop.permute.xlu0 %912
    %926 = vrot.lane.b32.xlu0 %v798, 96
    %v927 = vpop.permute.xlu0 %926
    %928 = vrot.lane.b32.xlu0 %v799, 96
    %v929 = vpop.permute.xlu0 %928
    %930 = vrot.lane.b32.xlu0 %v800, 96
    %v931 = vpop.permute.xlu0 %930
    %932 = vrot.lane.b32.xlu0 %v801, 96
    %v933 = vpop.permute.xlu0 %932
    %934 = vrot.lane.b32.xlu0 %v802, 96
    %v935 = vpop.permute.xlu0 %934
    %936 = vrot.lane.b32.xlu0 %v805, 96
    %v937 = vpop.permute.xlu0 %936
    %938 = vrot.lane.b32.xlu0 %v806, 96
    %v939 = vpop.permute.xlu0 %938
    %940 = vrot.lane.b32.xlu0 %v807, 96
    %v941 = vpop.permute.xlu0 %940
    %942 = vrot.lane.b32.xlu0 %v808, 96
    %v943 = vpop.permute.xlu0 %942
    %944 = vrot.lane.b32.xlu0 %v809, 96
    %v945 = vpop.permute.xlu0 %944
    %v956 = vrot.slane %v802, 1
    %v957 = vsel %vm108, %v956, %v823
    %v958 = vrot.slane %v809, 1
    %v959 = vsel %vm108, %v958, %v823
    %v970 = vrot.slane %v802, 2
    %v971 = vsel %vm193, %v970, %v874
    %v972 = vrot.slane %v809, 2
    %v973 = vsel %vm193, %v972, %v874
    %974 = vrot.lane.b32.xlu0 %v877, 32
    %v975 = vpop.permute.xlu0 %974
    %976 = vrot.lane.b32.xlu0 %v879, 32
    %v977 = vpop.permute.xlu0 %976
    %978 = vrot.lane.b32.xlu0 %v881, 32
    %v979 = vpop.permute.xlu0 %978
    %980 = vrot.lane.b32.xlu0 %v883, 32
    %v981 = vpop.permute.xlu0 %980
    %982 = vrot.lane.b32.xlu0 %v971, 32
    %v983 = vpop.permute.xlu0 %982
    %984 = vrot.lane.b32.xlu0 %v887, 32
    %v985 = vpop.permute.xlu0 %984
    %986 = vrot.lane.b32.xlu0 %v889, 32
    %v987 = vpop.permute.xlu0 %986
    %988 = vrot.lane.b32.xlu0 %v891, 32
    %v989 = vpop.permute.xlu0 %988
    %990 = vrot.lane.b32.xlu0 %v893, 32
    %v991 = vpop.permute.xlu0 %990
    %992 = vrot.lane.b32.xlu0 %v973, 32
    %v993 = vpop.permute.xlu0 %992
    %1006 = vrot.lane.b32.xlu0 %v799, 64
    %v1007 = vpop.permute.xlu0 %1006
    %1008 = vrot.lane.b32.xlu0 %v800, 64
    %v1009 = vpop.permute.xlu0 %1008
    %1010 = vrot.lane.b32.xlu0 %v801, 64
    %v1011 = vpop.permute.xlu0 %1010
    %1012 = vrot.lane.b32.xlu0 %v802, 64
    %v1013 = vpop.permute.xlu0 %1012
    %1014 = vrot.lane.b32.xlu0 %v803, 64
    %v1015 = vpop.permute.xlu0 %1014
    %1016 = vrot.lane.b32.xlu0 %v806, 64
    %v1017 = vpop.permute.xlu0 %1016
    %1018 = vrot.lane.b32.xlu0 %v807, 64
    %v1019 = vpop.permute.xlu0 %1018
    %1020 = vrot.lane.b32.xlu0 %v808, 64
    %v1021 = vpop.permute.xlu0 %1020
    %1022 = vrot.lane.b32.xlu0 %v809, 64
    %v1023 = vpop.permute.xlu0 %1022
    %1024 = vrot.lane.b32.xlu0 %v810, 64
    %v1025 = vpop.permute.xlu0 %1024
    %v1036 = vrot.slane %v803, 1
    %v1037 = vsel %vm108, %v1036, %v823
    %v1038 = vrot.slane %v810, 1
    %v1039 = vsel %vm108, %v1038, %v823
    %1040 = vrot.lane.b32.xlu0 %v828, 96
    %v1041 = vpop.permute.xlu0 %1040
    %1042 = vrot.lane.b32.xlu0 %v830, 96
    %v1043 = vpop.permute.xlu0 %1042
    %1044 = vrot.lane.b32.xlu0 %v832, 96
    %v1045 = vpop.permute.xlu0 %1044
    %1046 = vrot.lane.b32.xlu0 %v957, 96
    %v1047 = vpop.permute.xlu0 %1046
    %1048 = vrot.lane.b32.xlu0 %v1037, 96
    %v1049 = vpop.permute.xlu0 %1048
    %1050 = vrot.lane.b32.xlu0 %v838, 96
    %v1051 = vpop.permute.xlu0 %1050
    %1052 = vrot.lane.b32.xlu0 %v840, 96
    %v1053 = vpop.permute.xlu0 %1052
    %1054 = vrot.lane.b32.xlu0 %v842, 96
    %v1055 = vpop.permute.xlu0 %1054
    %1056 = vrot.lane.b32.xlu0 %v959, 96
    %v1057 = vpop.permute.xlu0 %1056
    %1058 = vrot.lane.b32.xlu0 %v1039, 96
    %v1059 = vpop.permute.xlu0 %1058
    %v1070 = vrot.slane %v803, 2
    %v1071 = vsel %vm193, %v1070, %v874
    %v1072 = vrot.slane %v810, 2
    %v1073 = vsel %vm193, %v1072, %v874
    %v1074 = vsel %vm607, %v797, %v844
    %v1075 = vsel %vm607, %v798, %v846
    %v1076 = vsel %vm607, %v799, %v848
    %v1077 = vsel %vm607, %v800, %v850
    %v1078 = vsel %vm607, %v801, %v852
    %v1079 = vsel %vm607, %v804, %v854
    %v1080 = vsel %vm607, %v805, %v856
    %v1081 = vsel %vm607, %v806, %v858
    %v1082 = vsel %vm607, %v807, %v860
    %v1083 = vsel %vm607, %v808, %v862
    %v1084 = vsel %vm667, %v1074, %v895
    %v1085 = vsel %vm667, %v1075, %v897
    %v1086 = vsel %vm667, %v1076, %v899
    %v1087 = vsel %vm667, %v1077, %v901
    %v1088 = vsel %vm667, %v1078, %v903
    %v1089 = vsel %vm667, %v1079, %v905
    %v1090 = vsel %vm667, %v1080, %v907
    %v1091 = vsel %vm667, %v1081, %v909
    %v1092 = vsel %vm667, %v1082, %v911
    %v1093 = vsel %vm667, %v1083, %v913
    %vm1094 = vcmask 785408
    %v1095 = vsel %vm1094, %v1084, %v927
    %v1096 = vsel %vm1094, %v1085, %v929
    %v1097 = vsel %vm1094, %v1086, %v931
    %v1098 = vsel %vm1094, %v1087, %v933
    %v1099 = vsel %vm1094, %v1088, %v935
    %v1100 = vsel %vm1094, %v1089, %v937
    %v1101 = vsel %vm1094, %v1090, %v939
    %v1102 = vsel %vm1094, %v1091, %v941
    %v1103 = vsel %vm1094, %v1092, %v943
    %v1104 = vsel %vm1094, %v1093, %v945
    %v1105 = vsel %vm607, %v826, %v975
    %v1106 = vsel %vm607, %v828, %v977
    %v1107 = vsel %vm607, %v830, %v979
    %v1108 = vsel %vm607, %v832, %v981
    %v1109 = vsel %vm607, %v957, %v983
    %v1110 = vsel %vm607, %v836, %v985
    %v1111 = vsel %vm607, %v838, %v987
    %v1112 = vsel %vm607, %v840, %v989
    %v1113 = vsel %vm607, %v842, %v991
    %v1114 = vsel %vm607, %v959, %v993
    %v1115 = vsel %vm667, %v1105, %v1007
    %v1116 = vsel %vm667, %v1106, %v1009
    %v1117 = vsel %vm667, %v1107, %v1011
    %v1118 = vsel %vm667, %v1108, %v1013
    %v1119 = vsel %vm667, %v1109, %v1015
    %v1120 = vsel %vm667, %v1110, %v1017
    %v1121 = vsel %vm667, %v1111, %v1019
    %v1122 = vsel %vm667, %v1112, %v1021
    %v1123 = vsel %vm667, %v1113, %v1023
    %v1124 = vsel %vm667, %v1114, %v1025
    %v1125 = vsel %vm1094, %v1115, %v1041
    %v1126 = vsel %vm1094, %v1116, %v1043
    %v1127 = vsel %vm1094, %v1117, %v1045
    %v1128 = vsel %vm1094, %v1118, %v1047
    %v1129 = vsel %vm1094, %v1119, %v1049
    %v1130 = vsel %vm1094, %v1120, %v1051
    %v1131 = vsel %vm1094, %v1121, %v1053
    %v1132 = vsel %vm1094, %v1122, %v1055
    %v1133 = vsel %vm1094, %v1123, %v1057
    %v1134 = vsel %vm1094, %v1124, %v1059
    %v1135 = vld [vmem:[%s3] sm:$0xff]
    %v1136 = vld [vmem:[%s3 + $0x8] sm:$0xff]
    %v1137 = vld [vmem:[%s3 + $0x10] sm:$0xff]
    %v1138 = vld [vmem:[%s3 + $0x18] sm:$0xff]
    %v1139 = vld [vmem:[%s3 + $0x20] sm:$0xff]
    %v1140 = vld [vmem:[%s3 + $0x28] sm:$0xff]
    %v1141 = vld [vmem:[%s3 + $0x30] sm:$0xff]
    %v1142 = vld [vmem:[%s3 + $0x38] sm:$0xff]
    %v1143 = vld [vmem:[%s3 + $0x40] sm:$0xff]
    %v1144 = vld [vmem:[%s3 + $0x48] sm:$0xff]
    %v1145 = vld [vmem:[%s3 + $0x50] sm:$0xff]
    %v1146 = vld [vmem:[%s3 + $0x58] sm:$0xff]
    %v1147 = vld [vmem:[%s3 + $0x60] sm:$0xff]
    %v1148 = vld [vmem:[%s3 + $0x68] sm:$0xff]
    %v1149 = vld [vmem:[%s3 + $0x70] sm:$0xff]
    %v1150 = vld [vmem:[%s3 + $0x78] sm:$0xff]
    %v1151 = vld [vmem:[%s3 + $0x80] sm:$0xff]
    %v1152 = vld [vmem:[%s3 + $0x88] sm:$0xff]
    %v1153 = vld [vmem:[%s3 + $0x90] sm:$0xff]
    %v1154 = vld [vmem:[%s3 + $0x98] sm:$0xff]
    %v1155 = vld [vmem:[%s3 + $0xa0] sm:$0xff]
    %v1156 = vld [vmem:[%s3 + $0xa8] sm:$0xff]
    %v1157 = vld [vmem:[%s3 + $0xb0] sm:$0xff]
    %v1158 = vld [vmem:[%s3 + $0xb8] sm:$0xff]
    %v1159 = vld [vmem:[%s3 + $0xc0] sm:$0xff]
    %v1160 = vld [vmem:[%s3 + $0xc8] sm:$0xff]
    %v1161 = vld [vmem:[%s3 + $0xd0] sm:$0xff]
    %v1162 = vld [vmem:[%s3 + $0xd8] sm:$0xff]
    %v1163 = vld [vmem:[%s3 + $0xe0] sm:$0xff]
    %v1164 = vld [vmem:[%s3 + $0xe8] sm:$0xff]
    %v1165 = vld [vmem:[%s3 + $0xf0] sm:$0xff]
    %v1166 = vld [vmem:[%s3 + $0xf8] sm:$0xff]
    %v1167 = vld [vmem:[%s3 + $0x100] sm:$0xff]
    %v1168 = vld [vmem:[%s3 + $0x108] sm:$0xff]
    %v1169 = vld [vmem:[%s3 + $0x110] sm:$0xff]
    %v1170 = vld [vmem:[%s3 + $0x118] sm:$0xff]
    %v1171 = vld [vmem:[%s4] sm:$0x1]
    %v1173 = vperm.slane %v1171, 0
    %v1175 = vsel %vm607, %v879, 0
    %v1177 = vsel %vm607, %v881, 0
    %v1179 = vsel %vm607, %v883, 0
    %v1181 = vsel %vm607, %v971, 0
    %v1183 = vsel %vm607, %v1071, 0
    %v1185 = vsel %vm607, %v889, 0
    %v1187 = vsel %vm607, %v891, 0
    %v1189 = vsel %vm607, %v893, 0
    %v1191 = vsel %vm607, %v973, 0
    %v1193 = vsel %vm607, %v1073, 0
    %1195 = vmatpush.msra.mxu0 %v1150
    %1196 = vmatpush.msra.mxu0 %v1149
    %1197 = vmatpush.msra.mxu0 %v1148
    %1198 = vmatpush.msra.mxu0 %v1147
    %1199 = vmatpush.msra.mxu0 %v1146
    %1200 = vmatpush.msra.mxu0 %v1145
    %1201 = vmatpush.msra.mxu0 %v1144
    %1202 = vmatpush.msra.mxu0 %v1143
    %1203 = vmatpush.msra.mxu0 %v1142
    %1204 = vmatpush.msra.mxu0 %v1141
    %1205 = vmatpush.msra.mxu0 %v1140
    %1206 = vmatpush.msra.mxu0 %v1139
    %1207 = vmatpush.msra.mxu0 %v1138
    %1208 = vmatpush.msra.mxu0 %v1137
    %1209 = vmatpush.msra.mxu0 %v1136
    %1210 = vmatpush.msra.mxu0 %v1135
    %1211 = vmatmul.f32.gmra.mxu0 %v1095
    %v1212 = vpop.f32.mrf.mxu0
    %v1213 = vadd.f32 %v1173, %v1212
    %1214 = vmatmul.f32.gmra.mxu0 %v1096
    %v1215 = vpop.f32.mrf.mxu0
    %v1216 = vadd.f32 %v1173, %v1215
    %1217 = vmatmul.f32.gmra.mxu0 %v1097
    %v1218 = vpop.f32.mrf.mxu0
    %v1219 = vadd.f32 %v1173, %v1218
    %1220 = vmatmul.f32.gmra.mxu0 %v1098
    %v1221 = vpop.f32.mrf.mxu0
    %v1222 = vadd.f32 %v1173, %v1221
    %1223 = vmatmul.f32.gmra.mxu0 %v1099
    %v1224 = vpop.f32.mrf.mxu0
    %v1225 = vadd.f32 %v1173, %v1224
    %1226 = vmatmul.f32.gmra.mxu0 %v1100
    %v1227 = vpop.f32.mrf.mxu0
    %v1228 = vadd.f32 %v1173, %v1227
    %1229 = vmatmul.f32.gmra.mxu0 %v1101
    %v1230 = vpop.f32.mrf.mxu0
    %v1231 = vadd.f32 %v1173, %v1230
    %1232 = vmatmul.f32.gmra.mxu0 %v1102
    %v1233 = vpop.f32.mrf.mxu0
    %v1234 = vadd.f32 %v1173, %v1233
    %1235 = vmatmul.f32.gmra.mxu0 %v1103
    %v1236 = vpop.f32.mrf.mxu0
    %v1237 = vadd.f32 %v1173, %v1236
    %1238 = vmatmul.f32.gmra.mxu0 %v1104
    %v1239 = vpop.f32.mrf.mxu0
    %v1240 = vadd.f32 %v1173, %v1239
    %1241 = vdwg.mxu0
    %1242 = vmatpush.msra.mxu0 %v1166
    %1243 = vmatpush.msra.mxu0 %v1165
    %1244 = vmatpush.msra.mxu0 %v1164
    %1245 = vmatpush.msra.mxu0 %v1163
    %1246 = vmatpush.msra.mxu0 %v1162
    %1247 = vmatpush.msra.mxu0 %v1161
    %1248 = vmatpush.msra.mxu0 %v1160
    %1249 = vmatpush.msra.mxu0 %v1159
    %1250 = vmatpush.msra.mxu0 %v1158
    %1251 = vmatpush.msra.mxu0 %v1157
    %1252 = vmatpush.msra.mxu0 %v1156
    %1253 = vmatpush.msra.mxu0 %v1155
    %1254 = vmatpush.msra.mxu0 %v1154
    %1255 = vmatpush.msra.mxu0 %v1153
    %1256 = vmatpush.msra.mxu0 %v1152
    %1257 = vmatpush.msra.mxu0 %v1151
    %1258 = vmatmul.f32.gmra.mxu0 %v1125
    %v1259 = vpop.f32.mrf.mxu0
    %v1260 = vadd.f32 %v1213, %v1259
    %1261 = vmatmul.f32.gmra.mxu0 %v1126
    %v1262 = vpop.f32.mrf.mxu0
    %v1263 = vadd.f32 %v1216, %v1262
    %1264 = vmatmul.f32.gmra.mxu0 %v1127
    %v1265 = vpop.f32.mrf.mxu0
    %v1266 = vadd.f32 %v1219, %v1265
    %1267 = vmatmul.f32.gmra.mxu0 %v1128
    %v1268 = vpop.f32.mrf.mxu0
    %v1269 = vadd.f32 %v1222, %v1268
    %1270 = vmatmul.f32.gmra.mxu0 %v1129
    %v1271 = vpop.f32.mrf.mxu0
    %v1272 = vadd.f32 %v1225, %v1271
    %1273 = vmatmul.f32.gmra.mxu0 %v1130
    %v1274 = vpop.f32.mrf.mxu0
    %v1275 = vadd.f32 %v1228, %v1274
    %1276 = vmatmul.f32.gmra.mxu0 %v1131
    %v1277 = vpop.f32.mrf.mxu0
    %v1278 = vadd.f32 %v1231, %v1277
    %1279 = vmatmul.f32.gmra.mxu0 %v1132
    %v1280 = vpop.f32.mrf.mxu0
    %v1281 = vadd.f32 %v1234, %v1280
    %1282 = vmatmul.f32.gmra.mxu0 %v1133
    %v1283 = vpop.f32.mrf.mxu0
    %v1284 = vadd.f32 %v1237, %v1283
    %1285 = vmatmul.f32.gmra.mxu0 %v1134
    %v1286 = vpop.f32.mrf.mxu0
    %v1287 = vadd.f32 %v1240, %v1286
    %1288 = vdwg.mxu0
    %1289 = vmatpush.msra.mxu0 0.0
    %1290 = vmatpush.msra.mxu0 0.0
    %1291 = vmatpush.msra.mxu0 0.0
    %1292 = vmatpush.msra.mxu0 0.0
    %1293 = vmatpush.msra.mxu0 0.0
    %1294 = vmatpush.msra.mxu0 0.0
    %1295 = vmatpush.msra.mxu0 0.0
    %1296 = vmatpush.msra.mxu0 0.0
    %1297 = vmatpush.msra.mxu0 0.0
    %1298 = vmatpush.msra.mxu0 0.0
    %1299 = vmatpush.msra.mxu0 0.0
    %1300 = vmatpush.msra.mxu0 0.0
    %1301 = vmatpush.msra.mxu0 %v1170
    %1302 = vmatpush.msra.mxu0 %v1169
    %1303 = vmatpush.msra.mxu0 %v1168
    %1304 = vmatpush.msra.mxu0 %v1167
    %1305 = vmatmul.f32.gmra.mxu0 %v1175
    %v1306 = vpop.f32.mrf.mxu0
    %v1307 = vadd.f32 %v1260, %v1306
    %1308 = vmatmul.f32.gmra.mxu0 %v1177
    %v1309 = vpop.f32.mrf.mxu0
    %v1310 = vadd.f32 %v1263, %v1309
    %1311 = vmatmul.f32.gmra.mxu0 %v1179
    %v1312 = vpop.f32.mrf.mxu0
    %v1313 = vadd.f32 %v1266, %v1312
    %1314 = vmatmul.f32.gmra.mxu0 %v1181
    %v1315 = vpop.f32.mrf.mxu0
    %v1316 = vadd.f32 %v1269, %v1315
    %1317 = vmatmul.f32.gmra.mxu0 %v1183
    %v1318 = vpop.f32.mrf.mxu0
    %v1319 = vadd.f32 %v1272, %v1318
    %1320 = vmatmul.f32.gmra.mxu0 %v1185
    %v1321 = vpop.f32.mrf.mxu0
    %v1322 = vadd.f32 %v1275, %v1321
    %1323 = vmatmul.f32.gmra.mxu0 %v1187
    %v1324 = vpop.f32.mrf.mxu0
    %v1325 = vadd.f32 %v1278, %v1324
    %1326 = vmatmul.f32.gmra.mxu0 %v1189
    %v1327 = vpop.f32.mrf.mxu0
    %v1328 = vadd.f32 %v1281, %v1327
    %1329 = vmatmul.f32.gmra.mxu0 %v1191
    %v1330 = vpop.f32.mrf.mxu0
    %v1331 = vadd.f32 %v1284, %v1330
    %1332 = vmatmul.f32.gmra.mxu0 %v1193
    %v1333 = vpop.f32.mrf.mxu0
    %v1334 = vadd.f32 %v1287, %v1333
    %1335 = vdwg.mxu0
    %v1336 = vmax.f32 %v1307, 0.0
    %v1337 = vmax.f32 %v1310, 0.0
    %v1338 = vmax.f32 %v1313, 0.0
    %v1339 = vmax.f32 %v1316, 0.0
    %v1340 = vmax.f32 %v1319, 0.0
    %v1341 = vmax.f32 %v1322, 0.0
    %v1342 = vmax.f32 %v1325, 0.0
    %v1343 = vmax.f32 %v1328, 0.0
    %v1344 = vmax.f32 %v1331, 0.0
    %v1345 = vmax.f32 %v1334, 0.0
    %v1348 = vrot.slane %v1341, 7
    %vm1349 = vcmask 1041409
    %v1350 = vsel %vm1349, %v1348, %v1336
    %v1352 = vrot.slane %v1336, 1
    %v1353 = vsel %vm1349, %v1341, %v1352
    %1354 = vrot.lane.b32.xlu0 %v1353, 64
    %v1355 = vpop.permute.xlu0 %1354
    %v1357 = vrot.slane %v1336, 2
    %v1358 = vrot.slane %v1341, 1
    %v1359 = vsel %vm1349, %v1358, %v1357
    %v1361 = vrot.slane %v1336, 3
    %v1362 = vrot.slane %v1341, 2
    %v1363 = vsel %vm1349, %v1362, %v1361
    %1364 = vrot.lane.b32.xlu0 %v1363, 64
    %v1365 = vpop.permute.xlu0 %1364
    %v1367 = vrot.slane %v1336, 4
    %v1368 = vrot.slane %v1341, 3
    %v1369 = vsel %vm1349, %v1368, %v1367
    %v1371 = vrot.slane %v1336, 5
    %v1372 = vrot.slane %v1341, 4
    %v1373 = vsel %vm1349, %v1372, %v1371
    %1374 = vrot.lane.b32.xlu0 %v1373, 64
    %v1375 = vpop.permute.xlu0 %1374
    %v1379 = vrot.slane %v1342, 7
    %v1380 = vsel %vm1349, %v1379, %v1337
    %v1382 = vrot.slane %v1337, 1
    %v1383 = vsel %vm1349, %v1342, %v1382
    %1384 = vrot.lane.b32.xlu0 %v1383, 64
    %v1385 = vpop.permute.xlu0 %1384
    %v1387 = vrot.slane %v1337, 2
    %v1388 = vrot.slane %v1342, 1
    %v1389 = vsel %vm1349, %v1388, %v1387
    %v1391 = vrot.slane %v1337, 3
    %v1392 = vrot.slane %v1342, 2
    %v1393 = vsel %vm1349, %v1392, %v1391
    %1394 = vrot.lane.b32.xlu0 %v1393, 64
    %v1395 = vpop.permute.xlu0 %1394
    %v1397 = vrot.slane %v1337, 4
    %v1398 = vrot.slane %v1342, 3
    %v1399 = vsel %vm1349, %v1398, %v1397
    %v1401 = vrot.slane %v1337, 5
    %v1402 = vrot.slane %v1342, 4
    %v1403 = vsel %vm1349, %v1402, %v1401
    %1404 = vrot.lane.b32.xlu0 %v1403, 64
    %v1405 = vpop.permute.xlu0 %1404
    %v1409 = vrot.slane %v1343, 7
    %v1410 = vsel %vm1349, %v1409, %v1338
    %v1412 = vrot.slane %v1338, 1
    %v1413 = vsel %vm1349, %v1343, %v1412
    %1414 = vrot.lane.b32.xlu0 %v1413, 64
    %v1415 = vpop.permute.xlu0 %1414
    %v1417 = vrot.slane %v1338, 2
    %v1418 = vrot.slane %v1343, 1
    %v1419 = vsel %vm1349, %v1418, %v1417
    %v1421 = vrot.slane %v1338, 3
    %v1422 = vrot.slane %v1343, 2
    %v1423 = vsel %vm1349, %v1422, %v1421
    %1424 = vrot.lane.b32.xlu0 %v1423, 64
    %v1425 = vpop.permute.xlu0 %1424
    %v1427 = vsel %vm667, %v1350, %v1355
    %v1428 = vsel %vm667, %v1359, %v1365
    %v1429 = vsel %vm667, %v1369, %v1375
    %v1430 = vsel %vm667, %v1380, %v1385
    %v1431 = vsel %vm667, %v1389, %v1395
    %v1432 = vsel %vm667, %v1399, %v1405
    %v1433 = vsel %vm667, %v1410, %v1415
    %v1434 = vsel %vm667, %v1419, %v1425
    %vm1435 = vcmask 1045509
    %v1436 = vsel %vm1435, %v1409, %v1338
    %v1438 = vsel %vm1435, %v1343, %v1412
    %1439 = vrot.lane.b32.xlu0 %v1438, 64
    %v1440 = vpop.permute.xlu0 %1439
    %v1444 = vrot.slane %v1339, 4
    %v1445 = vrot.slane %v1344, 3
    %v1446 = vsel %vm1435, %v1445, %v1444
    %v1448 = vrot.slane %v1339, 5
    %v1449 = vrot.slane %v1344, 4
    %v1450 = vsel %vm1435, %v1449, %v1448
    %1451 = vrot.lane.b32.xlu0 %v1450, 64
    %v1452 = vpop.permute.xlu0 %1451
    %v1454 = vrot.slane %v1339, 6
    %v1455 = vrot.slane %v1344, 5
    %v1456 = vsel %vm1435, %v1455, %v1454
    %v1458 = vrot.slane %v1339, 7
    %v1459 = vrot.slane %v1344, 6
    %v1460 = vsel %vm1435, %v1459, %v1458
    %1461 = vrot.lane.b32.xlu0 %v1460, 64
    %v1462 = vpop.permute.xlu0 %1461
    %v1464 = vrot.slane %v1344, 7
    %v1465 = vsel %vm1435, %v1464, %v1339
    %v1467 = vrot.slane %v1339, 1
    %v1468 = vsel %vm1435, %v1344, %v1467
    %1469 = vrot.lane.b32.xlu0 %v1468, 64
    %v1470 = vpop.permute.xlu0 %1469
    %v1474 = vrot.slane %v1340, 4
    %v1475 = vrot.slane %v1345, 3
    %v1476 = vsel %vm1435, %v1475, %v1474
    %v1478 = vrot.slane %v1340, 5
    %v1479 = vrot.slane %v1345, 4
    %v1480 = vsel %vm1435, %v1479, %v1478
    %1481 = vrot.lane.b32.xlu0 %v1480, 64
    %v1482 = vpop.permute.xlu0 %1481
    %v1484 = vrot.slane %v1340, 6
    %v1485 = vrot.slane %v1345, 5
    %v1486 = vsel %vm1435, %v1485, %v1484
    %v1488 = vrot.slane %v1340, 7
    %v1489 = vrot.slane %v1345, 6
    %v1490 = vsel %vm1435, %v1489, %v1488
    %1491 = vrot.lane.b32.xlu0 %v1490, 64
    %v1492 = vpop.permute.xlu0 %1491
    %v1494 = vrot.slane %v1345, 7
    %v1495 = vsel %vm1435, %v1494, %v1340
    %v1497 = vrot.slane %v1340, 1
    %v1498 = vsel %vm1435, %v1345, %v1497
    %1499 = vrot.lane.b32.xlu0 %v1498, 64
    %v1500 = vpop.permute.xlu0 %1499
    %v1502 = vsel %vm667, %v1436, %v1440
    %v1503 = vsel %vm667, %v1446, %v1452
    %v1504 = vsel %vm667, %v1456, %v1462
    %v1505 = vsel %vm667, %v1465, %v1470
    %v1506 = vsel %vm667, %v1476, %v1482
    %v1507 = vsel %vm667, %v1486, %v1492
    %v1508 = vsel %vm667, %v1495, %v1500
    %v1516 = vrot.slane %v1502, 4
    %v1517 = vrot.slane %v1503, 4
    %v1518 = vrot.slane %v1504, 4
    %v1519 = vrot.slane %v1505, 4
    %v1520 = vrot.slane %v1506, 4
    %v1521 = vrot.slane %v1507, 4
    %v1522 = vrot.slane %v1508, 4
    %s1530 = smul.u32 1920, 1
    %s1531 = sshll.u32 %s1530, 4
    %1532 = dma.done [#allocation3], %s1531
    %v1533 = vld [vmem:[#allocation2] sm:$0xff]
    %v1534 = vld [vmem:[#allocation2 + $0x8] sm:$0xff]
    %v1535 = vld [vmem:[#allocation2 + $0x10] sm:$0xff]
    %v1536 = vld [vmem:[#allocation2 + $0x18] sm:$0xff]
    %v1537 = vld [vmem:[#allocation2 + $0x20] sm:$0xff]
    %v1538 = vld [vmem:[#allocation2 + $0x28] sm:$0xff]
    %v1539 = vld [vmem:[#allocation2 + $0x30] sm:$0xff]
    %v1540 = vld [vmem:[#allocation2 + $0x38] sm:$0xff]
    %v1541 = vld [vmem:[#allocation2 + $0x40] sm:$0xff]
    %v1542 = vld [vmem:[#allocation2 + $0x48] sm:$0xff]
    %v1543 = vld [vmem:[#allocation2 + $0x50] sm:$0xff]
    %v1544 = vld [vmem:[#allocation2 + $0x58] sm:$0xff]
    %v1545 = vld [vmem:[#allocation2 + $0x60] sm:$0xff]
    %v1546 = vld [vmem:[#allocation2 + $0x68] sm:$0xff]
    %v1547 = vld [vmem:[#allocation2 + $0x70] sm:$0xff]
    %v1548 = vld [vmem:[#allocation2 + $0x78] sm:$0xff]
    %v1549 = vld [vmem:[#allocation2 + $0x80] sm:$0xff]
    %v1550 = vld [vmem:[#allocation2 + $0x88] sm:$0xff]
    %v1551 = vld [vmem:[#allocation2 + $0x90] sm:$0xff]
    %v1552 = vld [vmem:[#allocation2 + $0x98] sm:$0xff]
    %v1553 = vld [vmem:[#allocation2 + $0xa0] sm:$0xff]
    %v1554 = vld [vmem:[#allocation2 + $0xa8] sm:$0xff]
    %v1555 = vld [vmem:[#allocation2 + $0xb0] sm:$0xff]
    %v1556 = vld [vmem:[#allocation2 + $0xb8] sm:$0xff]
    %v1557 = vld [vmem:[#allocation2 + $0xc0] sm:$0xff]
    %v1558 = vld [vmem:[#allocation2 + $0xc8] sm:$0xff]
    %v1559 = vld [vmem:[#allocation2 + $0xd0] sm:$0xff]
    %v1560 = vld [vmem:[#allocation2 + $0xd8] sm:$0xff]
    %v1561 = vld [vmem:[#allocation2 + $0xe0] sm:$0xff]
    %v1562 = vld [vmem:[#allocation2 + $0xe8] sm:$0xff]
    %v1563 = vld [vmem:[#allocation2 + $0xf0] sm:$0xff]
    %v1564 = vld [vmem:[#allocation2 + $0xf8] sm:$0xff]
    %v1565 = vld [vmem:[#allocation2 + $0x100] sm:$0xff]
    %v1566 = vld [vmem:[#allocation2 + $0x108] sm:$0xff]
    %v1567 = vld [vmem:[#allocation2 + $0x110] sm:$0xff]
    %v1568 = vld [vmem:[#allocation2 + $0x118] sm:$0xff]
    %v1569 = vld [vmem:[#allocation2 + $0x120] sm:$0xff]
    %v1570 = vld [vmem:[#allocation2 + $0x128] sm:$0xff]
    %v1571 = vld [vmem:[#allocation2 + $0x130] sm:$0xff]
    %v1572 = vld [vmem:[#allocation2 + $0x138] sm:$0xff]
    %v1573 = vld [vmem:[#allocation2 + $0x140] sm:$0xff]
    %v1574 = vld [vmem:[#allocation2 + $0x148] sm:$0xff]
    %v1575 = vld [vmem:[#allocation2 + $0x150] sm:$0xff]
    %v1576 = vld [vmem:[#allocation2 + $0x158] sm:$0xff]
    %v1577 = vld [vmem:[#allocation2 + $0x160] sm:$0xff]
    %v1578 = vld [vmem:[#allocation2 + $0x168] sm:$0xff]
    %v1579 = vld [vmem:[#allocation2 + $0x170] sm:$0xff]
    %v1580 = vld [vmem:[#allocation2 + $0x178] sm:$0xff]
    %v1581 = vld [vmem:[#allocation2 + $0x180] sm:$0xff]
    %v1582 = vld [vmem:[#allocation2 + $0x188] sm:$0xff]
    %v1583 = vld [vmem:[#allocation2 + $0x190] sm:$0xff]
    %v1584 = vld [vmem:[#allocation2 + $0x198] sm:$0xff]
    %v1585 = vld [vmem:[#allocation2 + $0x1a0] sm:$0xff]
    %v1586 = vld [vmem:[#allocation2 + $0x1a8] sm:$0xff]
    %v1587 = vld [vmem:[#allocation2 + $0x1b0] sm:$0xff]
    %v1588 = vld [vmem:[#allocation2 + $0x1b8] sm:$0xff]
    %v1589 = vld [vmem:[#allocation2 + $0x1c0] sm:$0xff]
    %v1590 = vld [vmem:[#allocation2 + $0x1c8] sm:$0xff]
    %v1591 = vld [vmem:[#allocation2 + $0x1d0] sm:$0xff]
    %v1592 = vld [vmem:[#allocation2 + $0x1d8] sm:$0xff]
    %v1593 = vld [vmem:[#allocation2 + $0x1e0] sm:$0xff]
    %v1594 = vld [vmem:[#allocation2 + $0x1e8] sm:$0xff]
    %v1595 = vld [vmem:[#allocation2 + $0x1f0] sm:$0xff]
    %v1596 = vld [vmem:[#allocation2 + $0x1f8] sm:$0xff]
    %v1597 = vld [vmem:[#allocation2 + $0x200] sm:$0xff]
    %v1598 = vld [vmem:[#allocation2 + $0x208] sm:$0xff]
    %v1599 = vld [vmem:[#allocation2 + $0x210] sm:$0xff]
    %v1600 = vld [vmem:[#allocation2 + $0x218] sm:$0xff]
    %v1601 = vld [vmem:[#allocation2 + $0x220] sm:$0xff]
    %v1602 = vld [vmem:[#allocation2 + $0x228] sm:$0xff]
    %v1603 = vld [vmem:[#allocation2 + $0x230] sm:$0xff]
    %v1604 = vld [vmem:[#allocation2 + $0x238] sm:$0xff]
    %v1605 = vld [vmem:[#allocation2 + $0x240] sm:$0xff]
    %v1606 = vld [vmem:[#allocation2 + $0x248] sm:$0xff]
    %v1607 = vld [vmem:[#allocation2 + $0x250] sm:$0xff]
    %v1608 = vld [vmem:[#allocation2 + $0x258] sm:$0xff]
    %v1609 = vld [vmem:[#allocation2 + $0x260] sm:$0xff]
    %v1610 = vld [vmem:[#allocation2 + $0x268] sm:$0xff]
    %v1611 = vld [vmem:[#allocation2 + $0x270] sm:$0xff]
    %v1612 = vld [vmem:[#allocation2 + $0x278] sm:$0xff]
    %v1613 = vld [vmem:[#allocation2 + $0x280] sm:$0xff]
    %v1614 = vld [vmem:[#allocation2 + $0x288] sm:$0xff]
    %v1615 = vld [vmem:[#allocation2 + $0x290] sm:$0xff]
    %v1616 = vld [vmem:[#allocation2 + $0x298] sm:$0xff]
    %v1617 = vld [vmem:[#allocation2 + $0x2a0] sm:$0xff]
    %v1618 = vld [vmem:[#allocation2 + $0x2a8] sm:$0xff]
    %v1619 = vld [vmem:[#allocation2 + $0x2b0] sm:$0xff]
    %v1620 = vld [vmem:[#allocation2 + $0x2b8] sm:$0xff]
    %v1621 = vld [vmem:[#allocation2 + $0x2c0] sm:$0xff]
    %v1622 = vld [vmem:[#allocation2 + $0x2c8] sm:$0xff]
    %v1623 = vld [vmem:[#allocation2 + $0x2d0] sm:$0xff]
    %v1624 = vld [vmem:[#allocation2 + $0x2d8] sm:$0xff]
    %v1625 = vld [vmem:[#allocation2 + $0x2e0] sm:$0xff]
    %v1626 = vld [vmem:[#allocation2 + $0x2e8] sm:$0xff]
    %v1627 = vld [vmem:[#allocation2 + $0x2f0] sm:$0xff]
    %v1628 = vld [vmem:[#allocation2 + $0x2f8] sm:$0xff]
    %v1629 = vld [vmem:[#allocation2 + $0x300] sm:$0xff]
    %v1630 = vld [vmem:[#allocation2 + $0x308] sm:$0xff]
    %v1631 = vld [vmem:[#allocation2 + $0x310] sm:$0xff]
    %v1632 = vld [vmem:[#allocation2 + $0x318] sm:$0xff]
    %v1633 = vld [vmem:[#allocation2 + $0x320] sm:$0xff]
    %v1634 = vld [vmem:[#allocation2 + $0x328] sm:$0xff]
    %v1635 = vld [vmem:[#allocation2 + $0x330] sm:$0xff]
    %v1636 = vld [vmem:[#allocation2 + $0x338] sm:$0xff]
    %v1637 = vld [vmem:[#allocation2 + $0x340] sm:$0xff]
    %v1638 = vld [vmem:[#allocation2 + $0x348] sm:$0xff]
    %v1639 = vld [vmem:[#allocation2 + $0x350] sm:$0xff]
    %v1640 = vld [vmem:[#allocation2 + $0x358] sm:$0xff]
    %v1641 = vld [vmem:[#allocation2 + $0x360] sm:$0xff]
    %v1642 = vld [vmem:[#allocation2 + $0x368] sm:$0xff]
    %v1643 = vld [vmem:[#allocation2 + $0x370] sm:$0xff]
    %v1644 = vld [vmem:[#allocation2 + $0x378] sm:$0xff]
    %v1645 = vld [vmem:[#allocation2 + $0x380] sm:$0xff]
    %v1646 = vld [vmem:[#allocation2 + $0x388] sm:$0xff]
    %v1647 = vld [vmem:[#allocation2 + $0x390] sm:$0xff]
    %v1648 = vld [vmem:[#allocation2 + $0x398] sm:$0xff]
    %v1649 = vld [vmem:[#allocation2 + $0x3a0] sm:$0xff]
    %v1650 = vld [vmem:[#allocation2 + $0x3a8] sm:$0xff]
    %v1651 = vld [vmem:[#allocation2 + $0x3b0] sm:$0xff]
    %v1652 = vld [vmem:[#allocation2 + $0x3b8] sm:$0xff]
    %v1653 = vld [vmem:[#allocation2 + $0x3c0] sm:$0xff]
    %v1654 = vld [vmem:[#allocation2 + $0x3c8] sm:$0xff]
    %v1655 = vld [vmem:[#allocation2 + $0x3d0] sm:$0xff]
    %v1656 = vld [vmem:[#allocation2 + $0x3d8] sm:$0xff]
    %v1657 = vld [vmem:[#allocation2 + $0x3e0] sm:$0xff]
    %v1658 = vld [vmem:[#allocation2 + $0x3e8] sm:$0xff]
    %v1659 = vld [vmem:[#allocation2 + $0x3f0] sm:$0xff]
    %v1660 = vld [vmem:[#allocation2 + $0x3f8] sm:$0xff]
    %v1661 = vld [vmem:[#allocation2 + $0x400] sm:$0xff]
    %v1662 = vld [vmem:[#allocation2 + $0x408] sm:$0xff]
    %v1663 = vld [vmem:[#allocation2 + $0x410] sm:$0xff]
    %v1664 = vld [vmem:[#allocation2 + $0x418] sm:$0xff]
    %v1665 = vld [vmem:[#allocation2 + $0x420] sm:$0xff]
    %v1666 = vld [vmem:[#allocation2 + $0x428] sm:$0xff]
    %v1667 = vld [vmem:[#allocation2 + $0x430] sm:$0xff]
    %v1668 = vld [vmem:[#allocation2 + $0x438] sm:$0xff]
    %v1669 = vld [vmem:[#allocation2 + $0x440] sm:$0xff]
    %v1670 = vld [vmem:[#allocation2 + $0x448] sm:$0xff]
    %v1671 = vld [vmem:[#allocation2 + $0x450] sm:$0xff]
    %v1672 = vld [vmem:[#allocation2 + $0x458] sm:$0xff]
    %v1673 = vld [vmem:[#allocation2 + $0x460] sm:$0xff]
    %v1674 = vld [vmem:[#allocation2 + $0x468] sm:$0xff]
    %v1675 = vld [vmem:[#allocation2 + $0x470] sm:$0xff]
    %v1676 = vld [vmem:[#allocation2 + $0x478] sm:$0xff]
    %v1677 = vld [vmem:[#allocation2 + $0x480] sm:$0xff]
    %v1678 = vld [vmem:[#allocation2 + $0x488] sm:$0xff]
    %v1679 = vld [vmem:[#allocation2 + $0x490] sm:$0xff]
    %v1680 = vld [vmem:[#allocation2 + $0x498] sm:$0xff]
    %v1681 = vld [vmem:[#allocation2 + $0x4a0] sm:$0xff]
    %v1682 = vld [vmem:[#allocation2 + $0x4a8] sm:$0xff]
    %v1683 = vld [vmem:[#allocation2 + $0x4b0] sm:$0xff]
    %v1684 = vld [vmem:[#allocation2 + $0x4b8] sm:$0xff]
    %v1685 = vld [vmem:[#allocation2 + $0x4c0] sm:$0xff]
    %v1686 = vld [vmem:[#allocation2 + $0x4c8] sm:$0xff]
    %v1687 = vld [vmem:[#allocation2 + $0x4d0] sm:$0xff]
    %v1688 = vld [vmem:[#allocation2 + $0x4d8] sm:$0xff]
    %v1689 = vld [vmem:[#allocation2 + $0x4e0] sm:$0xff]
    %v1690 = vld [vmem:[#allocation2 + $0x4e8] sm:$0xff]
    %v1691 = vld [vmem:[#allocation2 + $0x4f0] sm:$0xff]
    %v1692 = vld [vmem:[#allocation2 + $0x4f8] sm:$0xff]
    %v1693 = vld [vmem:[#allocation2 + $0x500] sm:$0xff]
    %v1694 = vld [vmem:[#allocation2 + $0x508] sm:$0xff]
    %v1695 = vld [vmem:[#allocation2 + $0x510] sm:$0xff]
    %v1696 = vld [vmem:[#allocation2 + $0x518] sm:$0xff]
    %v1697 = vld [vmem:[#allocation2 + $0x520] sm:$0xff]
    %v1698 = vld [vmem:[#allocation2 + $0x528] sm:$0xff]
    %v1699 = vld [vmem:[#allocation2 + $0x530] sm:$0xff]
    %v1700 = vld [vmem:[#allocation2 + $0x538] sm:$0xff]
    %v1701 = vld [vmem:[#allocation2 + $0x540] sm:$0xff]
    %v1702 = vld [vmem:[#allocation2 + $0x548] sm:$0xff]
    %v1703 = vld [vmem:[#allocation2 + $0x550] sm:$0xff]
    %v1704 = vld [vmem:[#allocation2 + $0x558] sm:$0xff]
    %v1705 = vld [vmem:[#allocation2 + $0x560] sm:$0xff]
    %v1706 = vld [vmem:[#allocation2 + $0x568] sm:$0xff]
    %v1707 = vld [vmem:[#allocation2 + $0x570] sm:$0xff]
    %v1708 = vld [vmem:[#allocation2 + $0x578] sm:$0xff]
    %v1709 = vld [vmem:[#allocation2 + $0x580] sm:$0xff]
    %v1710 = vld [vmem:[#allocation2 + $0x588] sm:$0xff]
    %v1711 = vld [vmem:[#allocation2 + $0x590] sm:$0xff]
    %v1712 = vld [vmem:[#allocation2 + $0x598] sm:$0xff]
    %v1713 = vld [vmem:[#allocation2 + $0x5a0] sm:$0xff]
    %v1714 = vld [vmem:[#allocation2 + $0x5a8] sm:$0xff]
    %v1715 = vld [vmem:[#allocation2 + $0x5b0] sm:$0xff]
    %v1716 = vld [vmem:[#allocation2 + $0x5b8] sm:$0xff]
    %v1717 = vld [vmem:[#allocation2 + $0x5c0] sm:$0xff]
    %v1718 = vld [vmem:[#allocation2 + $0x5c8] sm:$0xff]
    %v1719 = vld [vmem:[#allocation2 + $0x5d0] sm:$0xff]
    %v1720 = vld [vmem:[#allocation2 + $0x5d8] sm:$0xff]
    %v1721 = vld [vmem:[#allocation2 + $0x5e0] sm:$0xff]
    %v1722 = vld [vmem:[#allocation2 + $0x5e8] sm:$0xff]
    %v1723 = vld [vmem:[#allocation2 + $0x5f0] sm:$0xff]
    %v1724 = vld [vmem:[#allocation2 + $0x5f8] sm:$0xff]
    %v1725 = vld [vmem:[#allocation2 + $0x600] sm:$0xff]
    %v1726 = vld [vmem:[#allocation2 + $0x608] sm:$0xff]
    %v1727 = vld [vmem:[#allocation2 + $0x610] sm:$0xff]
    %v1728 = vld [vmem:[#allocation2 + $0x618] sm:$0xff]
    %v1729 = vld [vmem:[#allocation2 + $0x620] sm:$0xff]
    %v1730 = vld [vmem:[#allocation2 + $0x628] sm:$0xff]
    %v1731 = vld [vmem:[#allocation2 + $0x630] sm:$0xff]
    %v1732 = vld [vmem:[#allocation2 + $0x638] sm:$0xff]
    %v1733 = vld [vmem:[#allocation2 + $0x640] sm:$0xff]
    %v1734 = vld [vmem:[#allocation2 + $0x648] sm:$0xff]
    %v1735 = vld [vmem:[#allocation2 + $0x650] sm:$0xff]
    %v1736 = vld [vmem:[#allocation2 + $0x658] sm:$0xff]
    %v1737 = vld [vmem:[#allocation2 + $0x660] sm:$0xff]
    %v1738 = vld [vmem:[#allocation2 + $0x668] sm:$0xff]
    %v1739 = vld [vmem:[#allocation2 + $0x670] sm:$0xff]
    %v1740 = vld [vmem:[#allocation2 + $0x678] sm:$0xff]
    %v1741 = vld [vmem:[#allocation2 + $0x680] sm:$0xff]
    %v1742 = vld [vmem:[#allocation2 + $0x688] sm:$0xff]
    %v1743 = vld [vmem:[#allocation2 + $0x690] sm:$0xff]
    %v1744 = vld [vmem:[#allocation2 + $0x698] sm:$0xff]
    %v1745 = vld [vmem:[#allocation2 + $0x6a0] sm:$0xff]
    %v1746 = vld [vmem:[#allocation2 + $0x6a8] sm:$0xff]
    %v1747 = vld [vmem:[#allocation2 + $0x6b0] sm:$0xff]
    %v1748 = vld [vmem:[#allocation2 + $0x6b8] sm:$0xff]
    %v1749 = vld [vmem:[#allocation2 + $0x6c0] sm:$0xff]
    %v1750 = vld [vmem:[#allocation2 + $0x6c8] sm:$0xff]
    %v1751 = vld [vmem:[#allocation2 + $0x6d0] sm:$0xff]
    %v1752 = vld [vmem:[#allocation2 + $0x6d8] sm:$0xff]
    %v1753 = vld [vmem:[#allocation2 + $0x6e0] sm:$0xff]
    %v1754 = vld [vmem:[#allocation2 + $0x6e8] sm:$0xff]
    %v1755 = vld [vmem:[#allocation2 + $0x6f0] sm:$0xff]
    %v1756 = vld [vmem:[#allocation2 + $0x6f8] sm:$0xff]
    %v1757 = vld [vmem:[#allocation2 + $0x700] sm:$0xff]
    %v1758 = vld [vmem:[#allocation2 + $0x708] sm:$0xff]
    %v1759 = vld [vmem:[#allocation2 + $0x710] sm:$0xff]
    %v1760 = vld [vmem:[#allocation2 + $0x718] sm:$0xff]
    %v1761 = vld [vmem:[#allocation2 + $0x720] sm:$0xff]
    %v1762 = vld [vmem:[#allocation2 + $0x728] sm:$0xff]
    %v1763 = vld [vmem:[#allocation2 + $0x730] sm:$0xff]
    %v1764 = vld [vmem:[#allocation2 + $0x738] sm:$0xff]
    %v1765 = vld [vmem:[#allocation2 + $0x740] sm:$0xff]
    %v1766 = vld [vmem:[#allocation2 + $0x748] sm:$0xff]
    %v1767 = vld [vmem:[#allocation2 + $0x750] sm:$0xff]
    %v1768 = vld [vmem:[#allocation2 + $0x758] sm:$0xff]
    %v1769 = vld [vmem:[#allocation2 + $0x760] sm:$0xff]
    %v1770 = vld [vmem:[#allocation2 + $0x768] sm:$0xff]
    %v1771 = vld [vmem:[#allocation2 + $0x770] sm:$0xff]
    %v1772 = vld [vmem:[#allocation2 + $0x778] sm:$0xff]
    %v1773 = vld [vmem:[%s6] sm:$0x1]
    %v1775 = vperm.slane %v1773, 0
    %1777 = vmatpush.msra.mxu0 %v1548
    %1778 = vmatpush.msra.mxu0 %v1547
    %1779 = vmatpush.msra.mxu0 %v1546
    %1780 = vmatpush.msra.mxu0 %v1545
    %1781 = vmatpush.msra.mxu0 %v1544
    %1782 = vmatpush.msra.mxu0 %v1543
    %1783 = vmatpush.msra.mxu0 %v1542
    %1784 = vmatpush.msra.mxu0 %v1541
    %1785 = vmatpush.msra.mxu0 %v1540
    %1786 = vmatpush.msra.mxu0 %v1539
    %1787 = vmatpush.msra.mxu0 %v1538
    %1788 = vmatpush.msra.mxu0 %v1537
    %1789 = vmatpush.msra.mxu0 %v1536
    %1790 = vmatpush.msra.mxu0 %v1535
    %1791 = vmatpush.msra.mxu0 %v1534
    %1792 = vmatpush.msra.mxu0 %v1533
    %1793 = vmatmul.f32.gmra.mxu0 %v1427
    %v1794 = vpop.f32.mrf.mxu0
    %v1795 = vadd.f32 %v1775, %v1794
    %1796 = vdwg.mxu0
    %1797 = vmatpush.msra.mxu0 %v1564
    %1798 = vmatpush.msra.mxu0 %v1563
    %1799 = vmatpush.msra.mxu0 %v1562
    %1800 = vmatpush.msra.mxu0 %v1561
    %1801 = vmatpush.msra.mxu0 %v1560
    %1802 = vmatpush.msra.mxu0 %v1559
    %1803 = vmatpush.msra.mxu0 %v1558
    %1804 = vmatpush.msra.mxu0 %v1557
    %1805 = vmatpush.msra.mxu0 %v1556
    %1806 = vmatpush.msra.mxu0 %v1555
    %1807 = vmatpush.msra.mxu0 %v1554
    %1808 = vmatpush.msra.mxu0 %v1553
    %1809 = vmatpush.msra.mxu0 %v1552
    %1810 = vmatpush.msra.mxu0 %v1551
    %1811 = vmatpush.msra.mxu0 %v1550
    %1812 = vmatpush.msra.mxu0 %v1549
    %1813 = vmatmul.f32.gmra.mxu0 %v1428
    %v1814 = vpop.f32.mrf.mxu0
    %v1815 = vadd.f32 %v1795, %v1814
    %1816 = vdwg.mxu0
    %1817 = vmatpush.msra.mxu0 %v1580
    %1818 = vmatpush.msra.mxu0 %v1579
    %1819 = vmatpush.msra.mxu0 %v1578
    %1820 = vmatpush.msra.mxu0 %v1577
    %1821 = vmatpush.msra.mxu0 %v1576
    %1822 = vmatpush.msra.mxu0 %v1575
    %1823 = vmatpush.msra.mxu0 %v1574
    %1824 = vmatpush.msra.mxu0 %v1573
    %1825 = vmatpush.msra.mxu0 %v1572
    %1826 = vmatpush.msra.mxu0 %v1571
    %1827 = vmatpush.msra.mxu0 %v1570
    %1828 = vmatpush.msra.mxu0 %v1569
    %1829 = vmatpush.msra.mxu0 %v1568
    %1830 = vmatpush.msra.mxu0 %v1567
    %1831 = vmatpush.msra.mxu0 %v1566
    %1832 = vmatpush.msra.mxu0 %v1565
    %1833 = vmatmul.f32.gmra.mxu0 %v1429
    %v1834 = vpop.f32.mrf.mxu0
    %v1835 = vadd.f32 %v1815, %v1834
    %1836 = vdwg.mxu0
    %1837 = vmatpush.msra.mxu0 %v1596
    %1838 = vmatpush.msra.mxu0 %v1595
    %1839 = vmatpush.msra.mxu0 %v1594
    %1840 = vmatpush.msra.mxu0 %v1593
    %1841 = vmatpush.msra.mxu0 %v1592
    %1842 = vmatpush.msra.mxu0 %v1591
    %1843 = vmatpush.msra.mxu0 %v1590
    %1844 = vmatpush.msra.mxu0 %v1589
    %1845 = vmatpush.msra.mxu0 %v1588
    %1846 = vmatpush.msra.mxu0 %v1587
    %1847 = vmatpush.msra.mxu0 %v1586
    %1848 = vmatpush.msra.mxu0 %v1585
    %1849 = vmatpush.msra.mxu0 %v1584
    %1850 = vmatpush.msra.mxu0 %v1583
    %1851 = vmatpush.msra.mxu0 %v1582
    %1852 = vmatpush.msra.mxu0 %v1581
    %1853 = vmatmul.f32.gmra.mxu0 %v1430
    %v1854 = vpop.f32.mrf.mxu0
    %v1855 = vadd.f32 %v1835, %v1854
    %1856 = vdwg.mxu0
    %1857 = vmatpush.msra.mxu0 %v1612
    %1858 = vmatpush.msra.mxu0 %v1611
    %1859 = vmatpush.msra.mxu0 %v1610
    %1860 = vmatpush.msra.mxu0 %v1609
    %1861 = vmatpush.msra.mxu0 %v1608
    %1862 = vmatpush.msra.mxu0 %v1607
    %1863 = vmatpush.msra.mxu0 %v1606
    %1864 = vmatpush.msra.mxu0 %v1605
    %1865 = vmatpush.msra.mxu0 %v1604
    %1866 = vmatpush.msra.mxu0 %v1603
    %1867 = vmatpush.msra.mxu0 %v1602
    %1868 = vmatpush.msra.mxu0 %v1601
    %1869 = vmatpush.msra.mxu0 %v1600
    %1870 = vmatpush.msra.mxu0 %v1599
    %1871 = vmatpush.msra.mxu0 %v1598
    %1872 = vmatpush.msra.mxu0 %v1597
    %1873 = vmatmul.f32.gmra.mxu0 %v1431
    %v1874 = vpop.f32.mrf.mxu0
    %v1875 = vadd.f32 %v1855, %v1874
    %1876 = vdwg.mxu0
    %1877 = vmatpush.msra.mxu0 %v1628
    %1878 = vmatpush.msra.mxu0 %v1627
    %1879 = vmatpush.msra.mxu0 %v1626
    %1880 = vmatpush.msra.mxu0 %v1625
    %1881 = vmatpush.msra.mxu0 %v1624
    %1882 = vmatpush.msra.mxu0 %v1623
    %1883 = vmatpush.msra.mxu0 %v1622
    %1884 = vmatpush.msra.mxu0 %v1621
    %1885 = vmatpush.msra.mxu0 %v1620
    %1886 = vmatpush.msra.mxu0 %v1619
    %1887 = vmatpush.msra.mxu0 %v1618
    %1888 = vmatpush.msra.mxu0 %v1617
    %1889 = vmatpush.msra.mxu0 %v1616
    %1890 = vmatpush.msra.mxu0 %v1615
    %1891 = vmatpush.msra.mxu0 %v1614
    %1892 = vmatpush.msra.mxu0 %v1613
    %1893 = vmatmul.f32.gmra.mxu0 %v1432
    %v1894 = vpop.f32.mrf.mxu0
    %v1895 = vadd.f32 %v1875, %v1894
    %1896 = vdwg.mxu0
    %1897 = vmatpush.msra.mxu0 %v1644
    %1898 = vmatpush.msra.mxu0 %v1643
    %1899 = vmatpush.msra.mxu0 %v1642
    %1900 = vmatpush.msra.mxu0 %v1641
    %1901 = vmatpush.msra.mxu0 %v1640
    %1902 = vmatpush.msra.mxu0 %v1639
    %1903 = vmatpush.msra.mxu0 %v1638
    %1904 = vmatpush.msra.mxu0 %v1637
    %1905 = vmatpush.msra.mxu0 %v1636
    %1906 = vmatpush.msra.mxu0 %v1635
    %1907 = vmatpush.msra.mxu0 %v1634
    %1908 = vmatpush.msra.mxu0 %v1633
    %1909 = vmatpush.msra.mxu0 %v1632
    %1910 = vmatpush.msra.mxu0 %v1631
    %1911 = vmatpush.msra.mxu0 %v1630
    %1912 = vmatpush.msra.mxu0 %v1629
    %1913 = vmatmul.f32.gmra.mxu0 %v1433
    %v1914 = vpop.f32.mrf.mxu0
    %v1915 = vadd.f32 %v1895, %v1914
    %1916 = vdwg.mxu0
    %1917 = vmatpush.msra.mxu0 %v1660
    %1918 = vmatpush.msra.mxu0 %v1659
    %1919 = vmatpush.msra.mxu0 %v1658
    %1920 = vmatpush.msra.mxu0 %v1657
    %1921 = vmatpush.msra.mxu0 %v1656
    %1922 = vmatpush.msra.mxu0 %v1655
    %1923 = vmatpush.msra.mxu0 %v1654
    %1924 = vmatpush.msra.mxu0 %v1653
    %1925 = vmatpush.msra.mxu0 %v1652
    %1926 = vmatpush.msra.mxu0 %v1651
    %1927 = vmatpush.msra.mxu0 %v1650
    %1928 = vmatpush.msra.mxu0 %v1649
    %1929 = vmatpush.msra.mxu0 %v1648
    %1930 = vmatpush.msra.mxu0 %v1647
    %1931 = vmatpush.msra.mxu0 %v1646
    %1932 = vmatpush.msra.mxu0 %v1645
    %1933 = vmatmul.f32.gmra.mxu0 %v1434
    %v1934 = vpop.f32.mrf.mxu0
    %v1935 = vadd.f32 %v1915, %v1934
    %1936 = vdwg.mxu0
    %1937 = vmatpush.msra.mxu0 %v1676
    %1938 = vmatpush.msra.mxu0 %v1675
    %1939 = vmatpush.msra.mxu0 %v1674
    %1940 = vmatpush.msra.mxu0 %v1673
    %1941 = vmatpush.msra.mxu0 %v1672
    %1942 = vmatpush.msra.mxu0 %v1671
    %1943 = vmatpush.msra.mxu0 %v1670
    %1944 = vmatpush.msra.mxu0 %v1669
    %1945 = vmatpush.msra.mxu0 %v1668
    %1946 = vmatpush.msra.mxu0 %v1667
    %1947 = vmatpush.msra.mxu0 %v1666
    %1948 = vmatpush.msra.mxu0 %v1665
    %1949 = vmatpush.msra.mxu0 %v1664
    %1950 = vmatpush.msra.mxu0 %v1663
    %1951 = vmatpush.msra.mxu0 %v1662
    %1952 = vmatpush.msra.mxu0 %v1661
    %1953 = vmatmul.f32.gmra.mxu0 %v1516
    %v1954 = vpop.f32.mrf.mxu0
    %v1955 = vadd.f32 %v1935, %v1954
    %1956 = vdwg.mxu0
    %1957 = vmatpush.msra.mxu0 %v1692
    %1958 = vmatpush.msra.mxu0 %v1691
    %1959 = vmatpush.msra.mxu0 %v1690
    %1960 = vmatpush.msra.mxu0 %v1689
    %1961 = vmatpush.msra.mxu0 %v1688
    %1962 = vmatpush.msra.mxu0 %v1687
    %1963 = vmatpush.msra.mxu0 %v1686
    %1964 = vmatpush.msra.mxu0 %v1685
    %1965 = vmatpush.msra.mxu0 %v1684
    %1966 = vmatpush.msra.mxu0 %v1683
    %1967 = vmatpush.msra.mxu0 %v1682
    %1968 = vmatpush.msra.mxu0 %v1681
    %1969 = vmatpush.msra.mxu0 %v1680
    %1970 = vmatpush.msra.mxu0 %v1679
    %1971 = vmatpush.msra.mxu0 %v1678
    %1972 = vmatpush.msra.mxu0 %v1677
    %1973 = vmatmul.f32.gmra.mxu0 %v1517
    %v1974 = vpop.f32.mrf.mxu0
    %v1975 = vadd.f32 %v1955, %v1974
    %1976 = vdwg.mxu0
    %1977 = vmatpush.msra.mxu0 %v1708
    %1978 = vmatpush.msra.mxu0 %v1707
    %1979 = vmatpush.msra.mxu0 %v1706
    %1980 = vmatpush.msra.mxu0 %v1705
    %1981 = vmatpush.msra.mxu0 %v1704
    %1982 = vmatpush.msra.mxu0 %v1703
    %1983 = vmatpush.msra.mxu0 %v1702
    %1984 = vmatpush.msra.mxu0 %v1701
    %1985 = vmatpush.msra.mxu0 %v1700
    %1986 = vmatpush.msra.mxu0 %v1699
    %1987 = vmatpush.msra.mxu0 %v1698
    %1988 = vmatpush.msra.mxu0 %v1697
    %1989 = vmatpush.msra.mxu0 %v1696
    %1990 = vmatpush.msra.mxu0 %v1695
    %1991 = vmatpush.msra.mxu0 %v1694
    %1992 = vmatpush.msra.mxu0 %v1693
    %1993 = vmatmul.f32.gmra.mxu0 %v1518
    %v1994 = vpop.f32.mrf.mxu0
    %v1995 = vadd.f32 %v1975, %v1994
    %1996 = vdwg.mxu0
    %1997 = vmatpush.msra.mxu0 %v1724
    %1998 = vmatpush.msra.mxu0 %v1723
    %1999 = vmatpush.msra.mxu0 %v1722
    %2000 = vmatpush.msra.mxu0 %v1721
    %2001 = vmatpush.msra.mxu0 %v1720
    %2002 = vmatpush.msra.mxu0 %v1719
    %2003 = vmatpush.msra.mxu0 %v1718
    %2004 = vmatpush.msra.mxu0 %v1717
    %2005 = vmatpush.msra.mxu0 %v1716
    %2006 = vmatpush.msra.mxu0 %v1715
    %2007 = vmatpush.msra.mxu0 %v1714
    %2008 = vmatpush.msra.mxu0 %v1713
    %2009 = vmatpush.msra.mxu0 %v1712
    %2010 = vmatpush.msra.mxu0 %v1711
    %2011 = vmatpush.msra.mxu0 %v1710
    %2012 = vmatpush.msra.mxu0 %v1709
    %2013 = vmatmul.f32.gmra.mxu0 %v1519
    %v2014 = vpop.f32.mrf.mxu0
    %v2015 = vadd.f32 %v1995, %v2014
    %2016 = vdwg.mxu0
    %2017 = vmatpush.msra.mxu0 %v1740
    %2018 = vmatpush.msra.mxu0 %v1739
    %2019 = vmatpush.msra.mxu0 %v1738
    %2020 = vmatpush.msra.mxu0 %v1737
    %2021 = vmatpush.msra.mxu0 %v1736
    %2022 = vmatpush.msra.mxu0 %v1735
    %2023 = vmatpush.msra.mxu0 %v1734
    %2024 = vmatpush.msra.mxu0 %v1733
    %2025 = vmatpush.msra.mxu0 %v1732
    %2026 = vmatpush.msra.mxu0 %v1731
    %2027 = vmatpush.msra.mxu0 %v1730
    %2028 = vmatpush.msra.mxu0 %v1729
    %2029 = vmatpush.msra.mxu0 %v1728
    %2030 = vmatpush.msra.mxu0 %v1727
    %2031 = vmatpush.msra.mxu0 %v1726
    %2032 = vmatpush.msra.mxu0 %v1725
    %2033 = vmatmul.f32.gmra.mxu0 %v1520
    %v2034 = vpop.f32.mrf.mxu0
    %v2035 = vadd.f32 %v2015, %v2034
    %2036 = vdwg.mxu0
    %2037 = vmatpush.msra.mxu0 %v1756
    %2038 = vmatpush.msra.mxu0 %v1755
    %2039 = vmatpush.msra.mxu0 %v1754
    %2040 = vmatpush.msra.mxu0 %v1753
    %2041 = vmatpush.msra.mxu0 %v1752
    %2042 = vmatpush.msra.mxu0 %v1751
    %2043 = vmatpush.msra.mxu0 %v1750
    %2044 = vmatpush.msra.mxu0 %v1749
    %2045 = vmatpush.msra.mxu0 %v1748
    %2046 = vmatpush.msra.mxu0 %v1747
    %2047 = vmatpush.msra.mxu0 %v1746
    %2048 = vmatpush.msra.mxu0 %v1745
    %2049 = vmatpush.msra.mxu0 %v1744
    %2050 = vmatpush.msra.mxu0 %v1743
    %2051 = vmatpush.msra.mxu0 %v1742
    %2052 = vmatpush.msra.mxu0 %v1741
    %2053 = vmatmul.f32.gmra.mxu0 %v1521
    %v2054 = vpop.f32.mrf.mxu0
    %v2055 = vadd.f32 %v2035, %v2054
    %2056 = vdwg.mxu0
    %2057 = vmatpush.msra.mxu0 %v1772
    %2058 = vmatpush.msra.mxu0 %v1771
    %2059 = vmatpush.msra.mxu0 %v1770
    %2060 = vmatpush.msra.mxu0 %v1769
    %2061 = vmatpush.msra.mxu0 %v1768
    %2062 = vmatpush.msra.mxu0 %v1767
    %2063 = vmatpush.msra.mxu0 %v1766
    %2064 = vmatpush.msra.mxu0 %v1765
    %2065 = vmatpush.msra.mxu0 %v1764
    %2066 = vmatpush.msra.mxu0 %v1763
    %2067 = vmatpush.msra.mxu0 %v1762
    %2068 = vmatpush.msra.mxu0 %v1761
    %2069 = vmatpush.msra.mxu0 %v1760
    %2070 = vmatpush.msra.mxu0 %v1759
    %2071 = vmatpush.msra.mxu0 %v1758
    %2072 = vmatpush.msra.mxu0 %v1757
    %2073 = vmatmul.f32.gmra.mxu0 %v1522
    %v2074 = vpop.f32.mrf.mxu0
    %v2075 = vadd.f32 %v2055, %v2074
    %2076 = vdwg.mxu0
    %v2077 = vmax.f32 %v2075, 0.0
    %v2078 = vld [vmem:[%s7] sm:$0xff]
    %v2079 = vld [vmem:[%s7 + $0x8] sm:$0xff]
    %v2080 = vld [vmem:[%s7 + $0x10] sm:$0xff]
    %v2081 = vld [vmem:[%s7 + $0x18] sm:$0xff]
    %v2082 = vld [vmem:[%s7 + $0x20] sm:$0xff]
    %v2083 = vld [vmem:[%s7 + $0x28] sm:$0xff]
    %v2084 = vld [vmem:[%s7 + $0x30] sm:$0xff]
    %v2085 = vld [vmem:[%s7 + $0x38] sm:$0xff]
    %v2086 = vld [vmem:[%s7 + $0x40] sm:$0xff]
    %v2087 = vld [vmem:[%s7 + $0x48] sm:$0xff]
    %v2088 = vld [vmem:[%s7 + $0x50] sm:$0xff]
    %v2089 = vld [vmem:[%s7 + $0x58] sm:$0xff]
    %v2090 = vld [vmem:[%s7 + $0x60] sm:$0xff]
    %v2091 = vld [vmem:[%s7 + $0x68] sm:$0xff]
    %v2092 = vld [vmem:[%s7 + $0x70] sm:$0xff]
    %v2093 = vld [vmem:[%s7 + $0x78] sm:$0xff]
    %v2094 = vld [vmem:[%s8] sm:$0x1]
    %v2096 = vperm.slane %v2094, 0
    %2098 = vmatpush.msra.mxu0 %v2093
    %2099 = vmatpush.msra.mxu0 %v2092
    %2100 = vmatpush.msra.mxu0 %v2091
    %2101 = vmatpush.msra.mxu0 %v2090
    %2102 = vmatpush.msra.mxu0 %v2089
    %2103 = vmatpush.msra.mxu0 %v2088
    %2104 = vmatpush.msra.mxu0 %v2087
    %2105 = vmatpush.msra.mxu0 %v2086
    %2106 = vmatpush.msra.mxu0 %v2085
    %2107 = vmatpush.msra.mxu0 %v2084
    %2108 = vmatpush.msra.mxu0 %v2083
    %2109 = vmatpush.msra.mxu0 %v2082
    %2110 = vmatpush.msra.mxu0 %v2081
    %2111 = vmatpush.msra.mxu0 %v2080
    %2112 = vmatpush.msra.mxu0 %v2079
    %2113 = vmatpush.msra.mxu0 %v2078
    %2114 = vmatmul.f32.gmra.mxu0 %v2077
    %v2115 = vpop.f32.mrf.mxu0
    %v2116 = vadd.f32 %v2096, %v2115
    %2117 = vdwg.mxu0
    %vm2118 = vcmask 25600
    %2119 = vst.msk [vmem:[#allocation4] sm:$0x3] %vm2118, %v2116
    // Predicated region
    $region38: #{qnet_forward.1} parent=1 // pred_check
      _
    $region39: #{qnet_forward.1} parent=1 // pred_check_branch
      %2121 = sbr.rel (0) target = $region41
    $region40: #{qnet_forward.1} parent=1 // pred_region
      %2123 = vsyncadd [#allocation5], 0
      %s2125 = sshll.u32 [#allocation4], 4
      %s2126 = int_to_ptr.vmem [resolvable:$true] %s2125
      %s2127 = sshll.u32 %s9, 4
      %s2128 = int_to_ptr.hbm [resolvable:$true] %s2127
      %2130 = dma.vmem_to_hbm [thread:$0]  %s2126, 32, %s2128, [#allocation5]
    $region41: #{qnet_forward.1} parent=1 // pred_fallthru
      _
    // Predicated region
    $region42: #{qnet_forward.1} parent=1 // pred_check
      _
    $region43: #{qnet_forward.1} parent=1 // pred_check_branch
      %2132 = sbr.rel (0) target = $region45
    $region44: #{qnet_forward.1} parent=1 // pred_region
      %2134 = dma.done [#allocation5], 32
    $region45: #{qnet_forward.1} parent=1 // pred_fallthru
      _
    %2135 = vsyncpa [#allocation5], 1
  %2136 = vsyncmov [#allocation3]
  %s2137 = vpop.sfrf %2136
  %p2138 = scmp.eq.s32.totalorder %s2137, 0
  %p2139 = pneg %p2138
  %2141 = shalt.err (%p2139)

</llo_original>
